<compile_context>
chip_gen: v7x
topology: tpu7x:2x2x1
jax: 0.10.0
libtpu: 0.0.40
codegen_flags: <defaults>
</compile_context>

<pallas_src>
import functools

import jax
import jax.numpy as jnp
from jax import lax
from jax.experimental import pallas as pl
from jax.experimental.pallas import tpu as pltpu


def _vmem_budgets():
    """(tile budget, scoped VMEM limit) in bytes, selected per TPU generation."""
    try:
        cap = int(pltpu.get_tpu_info().vmem_capacity_bytes)
    except Exception:
        cap = 64 * 1024 * 1024                      # conservative (v7x-sized) fallback
    if cap >= 100 * (1 << 20):                      # v5e / v6e: 128 MiB physical VMEM
        return 40 * (1 << 20), 100 * (1 << 20)
    return 16 * (1 << 20), 48 * (1 << 20)           # v7x: 64 MiB physical VMEM


def _pick_d_tile(D, per_d_bytes, budget_bytes):
    """Largest multiple-of-8 D tile whose working set fits the budget.

    Returns (tD, D_pad) with tD % 8 == 0 and D_pad % tD == 0 (D is padded up to
    the next multiple of 8 when needed; tD = 8 always divides that).
    """
    d8 = ((D + 7) // 8) * 8
    max_td = max(8, (budget_bytes // max(per_d_bytes, 1)) // 8 * 8)
    if max_td >= d8:
        return d8, d8
    td = max_td
    while td > 8 and d8 % td != 0:
        td -= 8
    return td, d8


# ---------------------------------------------------------------------------
# Pass 1: coordinate pooling (per-tile partial sums; means taken in the glue).
# ---------------------------------------------------------------------------
def _coord_pool_kernel(x_ref, sel_ref, sum_d_ref, part_h_ref, part_w_ref, *,
                       precision):
    """One (batch, D-tile) step of coordinate pooling.

    x_ref:      (1, C, tD, H*W)  lane-dense input tile (native dtype)
    sel_ref:    (H*W, H+W)       constant 0/1 selector (hw->h | hw->w columns)
    sum_d_ref:  (1, 1, C, tD)    sum over (H, W) for each d of this tile
    part_h_ref: (1, 1, C, H)     partial sum over (tD, W); nD-reduced in glue
    part_w_ref: (1, 1, C, W)     partial sum over (tD, H); nD-reduced in glue
    """
    C, tD, HW = x_ref.shape[1], x_ref.shape[2], x_ref.shape[3]
    H = part_h_ref.shape[3]

    # One MXU matmul does both the W-reduce and the H-reduce (and absorbs the
    # cast to f32); only tiny tD / H reductions remain on the VPU/XLU.
    x2 = x_ref[0].reshape(C * tD, HW)            # layout-preserving (tD % 8 == 0)
    y = jnp.dot(x2, sel_ref[...],
                preferred_element_type=jnp.float32,
                precision=precision)             # (C*tD, H+W) on the MXU
    y = y.reshape(C, tD, -1)
    part_hd = y[:, :, :H]                        # (C, tD, H)  = sum over w
    part_wd = y[:, :, H:]                        # (C, tD, W)  = sum over h
    part_h_ref[0, 0] = jnp.sum(part_hd, axis=1)  # (C, H)   small tD reduce
    part_w_ref[0, 0] = jnp.sum(part_wd, axis=1)  # (C, W)
    sum_d_ref[0, 0] = jnp.sum(part_hd, axis=2)   # (C, tD)  small H reduce


# ---------------------------------------------------------------------------
# Pass 2: lane-dense broadcast multiply in the input dtype.
# ---------------------------------------------------------------------------
def _coord_scale_kernel(x_ref, a_d_ref, g_hw_ref, o_ref):
    """out[c, d, s] = x[c, d, s] * a_d[c, d] * g_hw[c, s].

    x_ref:    (1, C, tD, H*W)   input tile (native dtype)
    a_d_ref:  (1, 1, C, tD)     D-gate slice for this tile (native dtype)
    g_hw_ref: (1, C, H*W)       precomputed a_h (x) a_w gate (native dtype)
    """
    x = x_ref[0]                                 # (C, tD, HW)
    g_d = a_d_ref[0, 0]                          # (C, tD)   no transpose needed
    g_hw = g_hw_ref[0]                           # (C, HW)
    o_ref[0] = (x * g_d[:, :, None] * g_hw[:, None, :]).astype(o_ref.dtype)


# ---------------------------------------------------------------------------
# Excitation MLP: conv1 / bn1 / h_swish / conv_{d,h,w} / sigmoid (eval-mode BN).
# Shared between the Pallas forward and the pure-JAX reference.
# ---------------------------------------------------------------------------
def _excitation(pooled_d, pooled_h, pooled_w, p):
    """pooled_*: (N, L, C) mean-pooled coordinate descriptors -> per-coordinate gates."""
    D = pooled_d.shape[1]
    H = pooled_h.shape[1]
    y = jnp.concatenate([pooled_d, pooled_h, pooled_w], axis=1)       # (N, D+H+W, C)
    y = jnp.einsum("nlc,mc->nlm", y, p["w1"],
                   precision=lax.Precision.HIGHEST) + p["b1"]         # conv1 (1x1x1)
    inv = lax.rsqrt(p["bn_var"] + p["bn_eps"])
    y = (y - p["bn_mean"]) * inv * p["bn_gamma"] + p["bn_beta"]       # BN (eval mode)
    y = y * jnp.clip(y + 3.0, 0.0, 6.0) * (1.0 / 6.0)                 # h_swish

    yd, yh, yw = y[:, :D], y[:, D:D + H], y[:, D + H:]

    def head(z, w, b):
        return jax.nn.sigmoid(
            jnp.einsum("nlm,cm->nlc", z, w, precision=lax.Precision.HIGHEST) + b)

    a_d = head(yd, p["wd"], p["bd"])        # (N, D, C)
    a_h = head(yh, p["wh"], p["bh"])        # (N, H, C)
    a_w = head(yw, p["ww"], p["bw"])        # (N, W, C)
    return a_d, a_h, a_w


# ---------------------------------------------------------------------------
# Forward (Pallas pooling -> JAX excitation -> Pallas scaling).
# ---------------------------------------------------------------------------
def coord_att_forward(x, params):
    """x: (N, C, D, H, W).  Returns x * a_w * a_h * a_d (same shape/dtype)."""
    N, C, D, H, W = x.shape
    HW = H * W
    dtype = x.dtype
    bpe = jnp.dtype(dtype).itemsize

    tile_budget, vmem_limit = _vmem_budgets()
    # Pass-2 working set dominates: double-buffered x in + out tiles per unit of
    # D, plus the small a_d slice and f32 MXU result; the resident (double-
    # buffered) g_hw gate is reserved up front.
    per_d_bytes = 4 * C * HW * bpe + C * (H + W) * 4 + 2 * C * bpe
    reserve_bytes = 2 * C * HW * bpe + (2 << 20)
    tD, D_pad = _pick_d_tile(D, per_d_bytes,
                             max(tile_budget - reserve_bytes, 8 * per_d_bytes))
    nD = D_pad // tD

    x4 = x.reshape(N, C, D, HW)                  # lane-dense view for both passes
    if D_pad != D:
        # TODO(synk): masked tail tiles would avoid this extra padding copy of x.
        x4 = jnp.pad(x4, ((0, 0), (0, 0), (0, D_pad - D), (0, 0)))

    # Constant 0/1 selector: column j < H picks hw with h == j, column H + k
    # picks hw with w == k (hw = h * W + w).
    hw_ids = jnp.arange(HW, dtype=jnp.int32)
    sel = jnp.concatenate(
        [jax.nn.one_hot(hw_ids // W, H, dtype=dtype),
         jax.nn.one_hot(hw_ids % W, W, dtype=dtype)], axis=1)          # (HW, H+W)

    dot_prec = lax.Precision.HIGHEST if jnp.dtype(dtype) == jnp.float32 else None
    pool_kernel = functools.partial(_coord_pool_kernel, precision=dot_prec)

    # -------- Pass 1: coordinate pooling (per-tile partial sums, f32) --------
    sum_d_t, part_h, part_w = pl.pallas_call(
        pool_kernel,
        out_shape=(
            jax.ShapeDtypeStruct((N, nD, C, tD), jnp.float32),
            jax.ShapeDtypeStruct((N, nD, C, H), jnp.float32),
            jax.ShapeDtypeStruct((N, nD, C, W), jnp.float32),
        ),
        grid=(N, nD),
        in_specs=[
            pl.BlockSpec((1, C, tD, HW), lambda n, d: (n, 0, d, 0)),
            pl.BlockSpec((HW, H + W), lambda n, d: (0, 0)),
        ],
        out_specs=(
            pl.BlockSpec((1, 1, C, tD), lambda n, d: (n, d, 0, 0)),
            pl.BlockSpec((1, 1, C, H), lambda n, d: (n, d, 0, 0)),
            pl.BlockSpec((1, 1, C, W), lambda n, d: (n, d, 0, 0)),
        ),
        compiler_params=pltpu.CompilerParams(
            dimension_semantics=("parallel", "parallel"),
            vmem_limit_bytes=vmem_limit),
        cost_estimate=pl.CostEstimate(
            flops=2 * N * C * D_pad * HW * (H + W),
            transcendentals=0,
            bytes_accessed=N * C * D_pad * HW * bpe
                           + 4 * N * nD * C * (tD + H + W)),
    )(x4, sel)

    # -------- Tiny excitation MLP (plain JAX; negligible FLOPs) --------
    sum_d = jnp.transpose(sum_d_t, (0, 2, 1, 3)).reshape(N, C, D_pad)[:, :, :D]
    mean_d = jnp.transpose(sum_d, (0, 2, 1)) * (1.0 / float(H * W))            # (N, D, C)
    mean_h = jnp.transpose(jnp.sum(part_h, axis=1), (0, 2, 1)) * (1.0 / float(D * W))
    mean_w = jnp.transpose(jnp.sum(part_w, axis=1), (0, 2, 1)) * (1.0 / float(D * H))
    a_d, a_h, a_w = _excitation(mean_d, mean_h, mean_w, params)

    # Gates in the layouts pass 2 consumes, cast to x dtype so the scale kernel
    # never upcasts the full slab (for bf16 inputs the gates are re-quantized once).
    g_hw = (jnp.transpose(a_h, (0, 2, 1))[:, :, :, None] *
            jnp.transpose(a_w, (0, 2, 1))[:, :, None, :]).reshape(N, C, HW)
    g_hw = g_hw.astype(dtype)                                                  # (N, C, HW)
    a_d_c = jnp.transpose(a_d, (0, 2, 1))                                      # (N, C, D)
    if D_pad != D:
        a_d_c = jnp.pad(a_d_c, ((0, 0), (0, 0), (0, D_pad - D)))
    g_d = jnp.transpose(a_d_c.reshape(N, C, nD, tD), (0, 2, 1, 3)).astype(dtype)

    # -------- Pass 2: lane-dense broadcast multiply over the volume --------
    out = pl.pallas_call(
        _coord_scale_kernel,
        out_shape=jax.ShapeDtypeStruct((N, C, D_pad, HW), dtype),
        grid=(N, nD),
        in_specs=[
            pl.BlockSpec((1, C, tD, HW), lambda n, d: (n, 0, d, 0)),
            pl.BlockSpec((1, 1, C, tD), lambda n, d: (n, d, 0, 0)),
            pl.BlockSpec((1, C, HW), lambda n, d: (n, 0, 0)),
        ],
        out_specs=pl.BlockSpec((1, C, tD, HW), lambda n, d: (n, 0, d, 0)),
        compiler_params=pltpu.CompilerParams(
            dimension_semantics=("parallel", "parallel"),
            vmem_limit_bytes=vmem_limit),
        cost_estimate=pl.CostEstimate(
            flops=2 * N * C * D_pad * HW,
            transcendentals=0,
            bytes_accessed=(2 * N * C * D_pad * HW + N * C * HW) * bpe),
    )(x4, g_d, g_hw)

    if D_pad != D:
        out = out[:, :, :D, :]
    return out.reshape(N, C, D, H, W)


# ---------------------------------------------------------------------------
# Pure-JAX reference mirroring the PyTorch CoordAtt forward (eval-mode BN).
# ---------------------------------------------------------------------------
def coord_att_reference(x, params):
    mean_d = jnp.transpose(jnp.mean(x, axis=(3, 4)), (0, 2, 1))        # (N, D, C)
    mean_h = jnp.transpose(jnp.mean(x, axis=(2, 4)), (0, 2, 1))        # (N, H, C)
    mean_w = jnp.transpose(jnp.mean(x, axis=(2, 3)), (0, 2, 1))        # (N, W, C)
    a_d, a_h, a_w = _excitation(mean_d, mean_h, mean_w, params)
    a_d = jnp.transpose(a_d, (0, 2, 1))[:, :, :, None, None]           # (N, C, D, 1, 1)
    a_h = jnp.transpose(a_h, (0, 2, 1))[:, :, None, :, None]           # (N, C, 1, H, 1)
    a_w = jnp.transpose(a_w, (0, 2, 1))[:, :, None, None, :]           # (N, C, 1, 1, W)
    return x * a_w * a_h * a_d


if __name__ == "__main__":
    # Small shapes consistent with the module: batch=2, channels=4, D=H=W=8.
    N, C, D, H, W = 2, 4, 8, 8, 8
    reduction = 32
    mip = max(8, C // reduction)      # == 8, as in the PyTorch module

    key = jax.random.PRNGKey(0)
    keys = jax.random.split(key, 12)

    x = jax.random.normal(keys[0], (N, C, D, H, W), dtype=jnp.float32)

    def conv_init(kw, kb, out_c, in_c):
        bound = 1.0 / (in_c ** 0.5)   # PyTorch Conv3d default init range
        w = jax.random.uniform(kw, (out_c, in_c), jnp.float32, -bound, bound)
        b = jax.random.uniform(kb, (out_c,), jnp.float32, -bound, bound)
        return w, b

    w1, b1 = conv_init(keys[1], keys[2], mip, C)
    wd, bd = conv_init(keys[3], keys[4], C, mip)
    wh, bh = conv_init(keys[5], keys[6], C, mip)
    ww, bw = conv_init(keys[7], keys[8], C, mip)

    params = dict(
        w1=w1, b1=b1,
        bn_gamma=jax.random.uniform(keys[9], (mip,), jnp.float32, 0.5, 1.5),
        bn_beta=jax.random.uniform(keys[10], (mip,), jnp.float32, -0.2, 0.2),
        bn_mean=jax.random.uniform(keys[11], (mip,), jnp.float32, -0.1, 0.1),
        bn_var=jnp.linspace(0.5, 1.5, mip, dtype=jnp.float32),
        bn_eps=jnp.float32(1e-5),
        wd=wd, bd=bd, wh=wh, bh=bh, ww=ww, bw=bw,
    )

    out = jax.jit(coord_att_forward)(x, params)
    out = jax.block_until_ready(out)

    ref = coord_att_reference(x, params)
    assert out.shape == x.shape
    max_err = float(jnp.max(jnp.abs(out - ref)))
    assert jnp.allclose(out, ref, atol=1e-4, rtol=1e-4), (
        f"Pallas CoordAtt mismatch vs reference (max abs err = {max_err})")

    print("KERNEL_OK")
</pallas_src>

<mosaic_0001>
module attributes {stable_mosaic.version = 11 : i64} {
  func.func @_coord_pool_kernel(%arg0: i32, %arg1: i32, %arg2: memref<1x4x8x64xf32, #tpu.memory_space<vmem>>, %arg3: memref<64x16xf32, #tpu.memory_space<vmem>>, %arg4: memref<1x1x4x8xf32, #tpu.memory_space<vmem>>, %arg5: memref<1x1x4x8xf32, #tpu.memory_space<vmem>>, %arg6: memref<1x1x4x8xf32, #tpu.memory_space<vmem>>) attributes {dimension_semantics = [#tpu.dimension_semantics<parallel>, #tpu.dimension_semantics<parallel>], iteration_bounds = array<i64: 2, 1>, scalar_prefetch = 0 : i64, scratch_operands = 0 : i64, tpu.core_type = #tpu.core_type<tc>, window_params = [{transform_indices = @transform_0, window_bounds = array<i64: 1, 4, 8, 64>}, {pipeline_mode = #tpu.pipeline_mode<synchronous>, transform_indices = @transform_1, window_bounds = array<i64: 64, 16>}, {transform_indices = @transform_2, window_bounds = array<i64: 1, 1, 4, 8>}, {transform_indices = @transform_3, window_bounds = array<i64: 1, 1, 4, 8>}, {transform_indices = @transform_4, window_bounds = array<i64: 1, 1, 4, 8>}]} {
    %c0 = arith.constant 0 : index
    %c0_0 = arith.constant 0 : index
    %c0_1 = arith.constant 0 : index
    %c0_2 = arith.constant 0 : index
    %0 = vector.load %arg2[%c0, %c0_0, %c0_1, %c0_2] : memref<1x4x8x64xf32, #tpu.memory_space<vmem>>, vector<1x4x8x64xf32>
    %1 = vector.shape_cast %0 : vector<1x4x8x64xf32> to vector<4x8x64xf32>
    %2 = vector.shape_cast %1 : vector<4x8x64xf32> to vector<32x64xf32>
    %c0_3 = arith.constant 0 : index
    %c0_4 = arith.constant 0 : index
    %3 = vector.load %arg3[%c0_3, %c0_4] : memref<64x16xf32, #tpu.memory_space<vmem>>, vector<64x16xf32>
    %cst = arith.constant dense<0.000000e+00> : vector<32x16xf32>
    %4 = tpu.matmul %2, %3, %cst {dimension_numbers = #tpu.dot_dimension_numbers<[1], [0], [0], [1], [0, 0, 1, 1], [], []>, precision = #tpu.contract_precision<fp32>} : vector<32x64xf32>, vector<64x16xf32>, vector<32x16xf32> -> vector<32x16xf32>
    %5 = vector.shape_cast %4 : vector<32x16xf32> to vector<4x8x16xf32>
    %6 = vector.extract_strided_slice %5 {offsets = [0, 0, 0], sizes = [4, 8, 8], strides = [1, 1, 1]} : vector<4x8x16xf32> to vector<4x8x8xf32>
    %7 = vector.extract_strided_slice %5 {offsets = [0, 0, 8], sizes = [4, 8, 8], strides = [1, 1, 1]} : vector<4x8x16xf32> to vector<4x8x8xf32>
    %cst_5 = arith.constant dense<0.000000e+00> : vector<4x8xf32>
    %8 = vector.multi_reduction <add>, %6, %cst_5 [1] : vector<4x8x8xf32> to vector<4x8xf32>
    %c0_6 = arith.constant 0 : index
    %c0_7 = arith.constant 0 : index
    %c0_8 = arith.constant 0 : index
    %c0_9 = arith.constant 0 : index
    %9 = vector.load %arg5[%c0_6, %c0_7, %c0_8, %c0_9] : memref<1x1x4x8xf32, #tpu.memory_space<vmem>>, vector<1x1x4x8xf32>
    %10 = vector.shape_cast %9 : vector<1x1x4x8xf32> to vector<4x8xf32>
    %11 = vector.shape_cast %8 : vector<4x8xf32> to vector<1x1x4x8xf32>
    tpu.vector_store %arg5[%c0_6, %c0_7, %c0_8, %c0_9], %11 {strides = array<i32>} : memref<1x1x4x8xf32, #tpu.memory_space<vmem>>, vector<1x1x4x8xf32>,
    %cst_10 = arith.constant dense<0.000000e+00> : vector<4x8xf32>
    %12 = vector.multi_reduction <add>, %7, %cst_10 [1] : vector<4x8x8xf32> to vector<4x8xf32>
    %c0_11 = arith.constant 0 : index
    %c0_12 = arith.constant 0 : index
    %c0_13 = arith.constant 0 : index
    %c0_14 = arith.constant 0 : index
    %13 = vector.load %arg6[%c0_11, %c0_12, %c0_13, %c0_14] : memref<1x1x4x8xf32, #tpu.memory_space<vmem>>, vector<1x1x4x8xf32>
    %14 = vector.shape_cast %13 : vector<1x1x4x8xf32> to vector<4x8xf32>
    %15 = vector.shape_cast %12 : vector<4x8xf32> to vector<1x1x4x8xf32>
    tpu.vector_store %arg6[%c0_11, %c0_12, %c0_13, %c0_14], %15 {strides = array<i32>} : memref<1x1x4x8xf32, #tpu.memory_space<vmem>>, vector<1x1x4x8xf32>,
    %cst_15 = arith.constant dense<0.000000e+00> : vector<4x8xf32>
    %16 = vector.multi_reduction <add>, %6, %cst_15 [2] : vector<4x8x8xf32> to vector<4x8xf32>
    %c0_16 = arith.constant 0 : index
    %c0_17 = arith.constant 0 : index
    %c0_18 = arith.constant 0 : index
    %c0_19 = arith.constant 0 : index
    %17 = vector.load %arg4[%c0_16, %c0_17, %c0_18, %c0_19] : memref<1x1x4x8xf32, #tpu.memory_space<vmem>>, vector<1x1x4x8xf32>
    %18 = vector.shape_cast %17 : vector<1x1x4x8xf32> to vector<4x8xf32>
    %19 = vector.shape_cast %16 : vector<4x8xf32> to vector<1x1x4x8xf32>
    tpu.vector_store %arg4[%c0_16, %c0_17, %c0_18, %c0_19], %19 {strides = array<i32>} : memref<1x1x4x8xf32, #tpu.memory_space<vmem>>, vector<1x1x4x8xf32>,
    return
  }
  func.func @transform_0(%arg0: i32, %arg1: i32) -> (i32, i32, i32, i32) {
    %c0_i32 = arith.constant 0 : i32
    %c0_i32_0 = arith.constant 0 : i32
    %c0_i32_1 = arith.constant 0 : i32
    return %arg0, %c0_i32, %arg1, %c0_i32_0 : i32, i32, i32, i32
  }
  func.func @transform_1(%arg0: i32, %arg1: i32) -> (i32, i32) {
    %c0_i32 = arith.constant 0 : i32
    %c0_i32_0 = arith.constant 0 : i32
    %c0_i32_1 = arith.constant 0 : i32
    return %c0_i32, %c0_i32_0 : i32, i32
  }
  func.func @transform_2(%arg0: i32, %arg1: i32) -> (i32, i32, i32, i32) {
    %c0_i32 = arith.constant 0 : i32
    %c0_i32_0 = arith.constant 0 : i32
    %c0_i32_1 = arith.constant 0 : i32
    return %arg0, %arg1, %c0_i32, %c0_i32_0 : i32, i32, i32, i32
  }
  func.func @transform_3(%arg0: i32, %arg1: i32) -> (i32, i32, i32, i32) {
    %c0_i32 = arith.constant 0 : i32
    %c0_i32_0 = arith.constant 0 : i32
    %c0_i32_1 = arith.constant 0 : i32
    return %arg0, %arg1, %c0_i32, %c0_i32_0 : i32, i32, i32, i32
  }
  func.func @transform_4(%arg0: i32, %arg1: i32) -> (i32, i32, i32, i32) {
    %c0_i32 = arith.constant 0 : i32
    %c0_i32_0 = arith.constant 0 : i32
    %c0_i32_1 = arith.constant 0 : i32
    return %arg0, %arg1, %c0_i32, %c0_i32_0 : i32, i32, i32, i32
  }
}

module attributes {stable_mosaic.version = 11 : i64} {
  func.func @_coord_scale_kernel(%arg0: i32, %arg1: i32, %arg2: memref<1x4x8x64xf32, #tpu.memory_space<vmem>>, %arg3: memref<1x1x4x8xf32, #tpu.memory_space<vmem>>, %arg4: memref<1x4x64xf32, #tpu.memory_space<vmem>>, %arg5: memref<1x4x8x64xf32, #tpu.memory_space<vmem>>) attributes {dimension_semantics = [#tpu.dimension_semantics<parallel>, #tpu.dimension_semantics<parallel>], iteration_bounds = array<i64: 2, 1>, scalar_prefetch = 0 : i64, scratch_operands = 0 : i64, tpu.core_type = #tpu.core_type<tc>, window_params = [{transform_indices = @transform_0, window_bounds = array<i64: 1, 4, 8, 64>}, {transform_indices = @transform_1, window_bounds = array<i64: 1, 1, 4, 8>}, {transform_indices = @transform_2, window_bounds = array<i64: 1, 4, 64>}, {transform_indices = @transform_3, window_bounds = array<i64: 1, 4, 8, 64>}]} {
    %c0 = arith.constant 0 : index
    %c0_0 = arith.constant 0 : index
    %c0_1 = arith.constant 0 : index
    %c0_2 = arith.constant 0 : index
    %0 = vector.load %arg2[%c0, %c0_0, %c0_1, %c0_2] : memref<1x4x8x64xf32, #tpu.memory_space<vmem>>, vector<1x4x8x64xf32>
    %1 = vector.shape_cast %0 : vector<1x4x8x64xf32> to vector<4x8x64xf32>
    %c0_3 = arith.constant 0 : index
    %c0_4 = arith.constant 0 : index
    %c0_5 = arith.constant 0 : index
    %c0_6 = arith.constant 0 : index
    %2 = vector.load %arg3[%c0_3, %c0_4, %c0_5, %c0_6] : memref<1x1x4x8xf32, #tpu.memory_space<vmem>>, vector<1x1x4x8xf32>
    %3 = vector.shape_cast %2 : vector<1x1x4x8xf32> to vector<4x8xf32>
    %c0_7 = arith.constant 0 : index
    %c0_8 = arith.constant 0 : index
    %c0_9 = arith.constant 0 : index
    %4 = vector.load %arg4[%c0_7, %c0_8, %c0_9] : memref<1x4x64xf32, #tpu.memory_space<vmem>>, vector<1x4x64xf32>
    %5 = vector.shape_cast %4 : vector<1x4x64xf32> to vector<4x64xf32>
    %6 = vector.shape_cast %3 : vector<4x8xf32> to vector<4x8x1xf32>
    %7 = vector.broadcast %6 : vector<4x8x1xf32> to vector<4x8x64xf32>
    %8 = arith.mulf %1, %7 : vector<4x8x64xf32>
    %9 = vector.shape_cast %5 : vector<4x64xf32> to vector<4x1x64xf32>
    %10 = vector.broadcast %9 : vector<4x1x64xf32> to vector<4x8x64xf32>
    %11 = arith.mulf %8, %10 : vector<4x8x64xf32>
    %c0_10 = arith.constant 0 : index
    %c0_11 = arith.constant 0 : index
    %c0_12 = arith.constant 0 : index
    %c0_13 = arith.constant 0 : index
    %12 = vector.load %arg5[%c0_10, %c0_11, %c0_12, %c0_13] : memref<1x4x8x64xf32, #tpu.memory_space<vmem>>, vector<1x4x8x64xf32>
    %13 = vector.shape_cast %12 : vector<1x4x8x64xf32> to vector<4x8x64xf32>
    %14 = vector.shape_cast %11 : vector<4x8x64xf32> to vector<1x4x8x64xf32>
    tpu.vector_store %arg5[%c0_10, %c0_11, %c0_12, %c0_13], %14 {strides = array<i32>} : memref<1x4x8x64xf32, #tpu.memory_space<vmem>>, vector<1x4x8x64xf32>,
    return
  }
  func.func @transform_0(%arg0: i32, %arg1: i32) -> (i32, i32, i32, i32) {
    %c0_i32 = arith.constant 0 : i32
    %c0_i32_0 = arith.constant 0 : i32
    %c0_i32_1 = arith.constant 0 : i32
    return %arg0, %c0_i32, %arg1, %c0_i32_0 : i32, i32, i32, i32
  }
  func.func @transform_1(%arg0: i32, %arg1: i32) -> (i32, i32, i32, i32) {
    %c0_i32 = arith.constant 0 : i32
    %c0_i32_0 = arith.constant 0 : i32
    %c0_i32_1 = arith.constant 0 : i32
    return %arg0, %arg1, %c0_i32, %c0_i32_0 : i32, i32, i32, i32
  }
  func.func @transform_2(%arg0: i32, %arg1: i32) -> (i32, i32, i32) {
    %c0_i32 = arith.constant 0 : i32
    %c0_i32_0 = arith.constant 0 : i32
    %c0_i32_1 = arith.constant 0 : i32
    return %arg0, %c0_i32, %c0_i32_0 : i32, i32, i32
  }
  func.func @transform_3(%arg0: i32, %arg1: i32) -> (i32, i32, i32, i32) {
    %c0_i32 = arith.constant 0 : i32
    %c0_i32_0 = arith.constant 0 : i32
    %c0_i32_1 = arith.constant 0 : i32
    return %arg0, %c0_i32, %arg1, %c0_i32_0 : i32, i32, i32, i32
  }
}

</mosaic_0001>

<llo_original>
// kernel: coord_att_forward.3
$region0: #{coord_att_forward.3}
  #allocation0 [shape = 'u32[]', space=smem, size = 0x4, offset = 0x4, fixed_abs, tag = 'smem constant byte address 0x4 - core index']
  #allocation1 [shape = 'u32[144,128]{1,0:T(1,128)}', space=vmem, size = 0x12000, scoped, tag = 'internal scratch']
  %s0 = inlined_call_operand.vmem [shape: f32[2,4,8,64], index: 0, kind: input, shape index: {}]
  %s1 = inlined_call_operand.vmem [shape: f32[2,1,4,8], index: 1, kind: input, shape index: {}]
  %s2 = inlined_call_operand.vmem [shape: f32[2,4,64], index: 2, kind: input, shape index: {}]
  %s3 = inlined_call_operand.vmem [shape: f32[2,4,8,64], index: 3, kind: output, shape index: {}]
  %s4 = sld [smem:[#allocation0]]
  $region45: #{coord_att_forward.3} parent=0
    _
  %s6 = ssub.s32 1, %s4
  %s7 = scalar_select 0, %s6, %s4
  loop: start=0, step=1, limit=4
  $region2: #{coord_att_forward.3} parent=0 // loop_pre_header
    _
  $region3: #{coord_att_forward.3} parent=0 // loop_header
    %s9 = sphi 0, %s13
    %p10 = scmp.ge.s32.totalorder %s9, 4
    %s16 = sphi 0, %s28
    %s17 = sphi 0, %s24
    %s18 = sphi 0, %s16
    %s19 = sphi 0, %s17
    %s20 = sphi 0, %s18
    %s21 = sphi 0, %s19
    %s33 = sphi 0, %s35
    %s36 = sphi 0, %s33
    %s37 = sphi 0, %s36
    %s53 = sphi 0, %s37
    %s61 = sphi 0, %s63
    %s64 = sphi 0, %s61
    %s65 = sphi 0, %s64
    %s81 = sphi 0, %s65
    %s87 = sphi 0, %s89
    %s90 = sphi 0, %s87
    %s91 = sphi 0, %s90
    %s107 = sphi 0, %s91
    %s115 = sphi 0, %s117
    %s118 = sphi 0, %s115
    %s119 = sphi 0, %s118
    %s135 = sphi 0, %s119
  $region4: #{coord_att_forward.3} parent=0 // loop_header_branch
    %12 = sbr.rel (%p10) target = $region8
  $region5: #{coord_att_forward.3} parent=0 // loop_body
    %s14 = ssub.s32 %s9, 1
    %s15 = ssub.s32 %s9, 2
    %s22 = sadd.s32 1, %s17
    %p23 = scmp.ge.s32.totalorder %s22, 1
    %s24 = scalar_select %p23, 0, %s22
    %s25 = sadd.s32 1, %s16
    %s26 = scalar_select %p23, %s25, %s16
    %p27 = scmp.ge.s32.totalorder %s26, 2
    %s28 = scalar_select %p27, 0, %s26
    %s29 = ssub.s32 %s16, %s28
    %s30 = ssub.s32 %s17, %s24
    %s31 = sor.u32 %s29, %s30
    %p32 = scmp.eq.s32.totalorder %s31, 0
    %s34 = sadd.s32 %s33, 1
    %s35 = scalar_select %p32, %s33, %s34
    %p38 = pneg %p32
    %p39 = scmp.eq.s32.totalorder %s9, 1
    %p40 = por %p38, %p39
    %p41 = scmp.ne.s32.totalorder %s33, %s36
    %p42 = scmp.eq.s32.totalorder %s9, 0
    %p43 = por %p41, %p42
    %p44 = scmp.ne.s32.totalorder %s33, %s36
    %p45 = scmp.eq.s32.totalorder %s14, 1
    %p46 = por %p44, %p45
    %p47 = scmp.ne.s32.totalorder %s36, %s37
    %p48 = scmp.eq.s32.totalorder %s14, 0
    %p49 = por %p47, %p48
    %p50 = scmp.ne.s32.totalorder %s36, %s37
    %p51 = scmp.eq.s32.totalorder %s15, 1
    %p52 = por %p50, %p51
    %p54 = scmp.ne.s32.totalorder %s37, %s53
    %p55 = scmp.eq.s32.totalorder %s15, 0
    %p56 = por %p54, %p55
    %s57 = ssub.s32 %s16, %s28
    %s58 = ssub.s32 %s17, %s24
    %s59 = sor.u32 %s57, %s58
    %p60 = scmp.eq.s32.totalorder %s59, 0
    %s62 = sadd.s32 %s61, 1
    %s63 = scalar_select %p60, %s61, %s62
    %p66 = pneg %p60
    %p67 = scmp.eq.s32.totalorder %s9, 1
    %p68 = por %p66, %p67
    %p69 = scmp.ne.s32.totalorder %s61, %s64
    %p70 = scmp.eq.s32.totalorder %s9, 0
    %p71 = por %p69, %p70
    %p72 = scmp.ne.s32.totalorder %s61, %s64
    %p73 = scmp.eq.s32.totalorder %s14, 1
    %p74 = por %p72, %p73
    %p75 = scmp.ne.s32.totalorder %s64, %s65
    %p76 = scmp.eq.s32.totalorder %s14, 0
    %p77 = por %p75, %p76
    %p78 = scmp.ne.s32.totalorder %s64, %s65
    %p79 = scmp.eq.s32.totalorder %s15, 1
    %p80 = por %p78, %p79
    %p82 = scmp.ne.s32.totalorder %s65, %s81
    %p83 = scmp.eq.s32.totalorder %s15, 0
    %p84 = por %p82, %p83
    %s85 = ssub.s32 %s16, %s28
    %p86 = scmp.eq.s32.totalorder %s85, 0
    %s88 = sadd.s32 %s87, 1
    %s89 = scalar_select %p86, %s87, %s88
    %p92 = pneg %p86
    %p93 = scmp.eq.s32.totalorder %s9, 1
    %p94 = por %p92, %p93
    %p95 = scmp.ne.s32.totalorder %s87, %s90
    %p96 = scmp.eq.s32.totalorder %s9, 0
    %p97 = por %p95, %p96
    %p98 = scmp.ne.s32.totalorder %s87, %s90
    %p99 = scmp.eq.s32.totalorder %s14, 1
    %p100 = por %p98, %p99
    %p101 = scmp.ne.s32.totalorder %s90, %s91
    %p102 = scmp.eq.s32.totalorder %s14, 0
    %p103 = por %p101, %p102
    %p104 = scmp.ne.s32.totalorder %s90, %s91
    %p105 = scmp.eq.s32.totalorder %s15, 1
    %p106 = por %p104, %p105
    %p108 = scmp.ne.s32.totalorder %s91, %s107
    %p109 = scmp.eq.s32.totalorder %s15, 0
    %p110 = por %p108, %p109
    %s111 = ssub.s32 %s16, %s28
    %s112 = ssub.s32 %s17, %s24
    %s113 = sor.u32 %s111, %s112
    %p114 = scmp.eq.s32.totalorder %s113, 0
    %s116 = sadd.s32 %s115, 1
    %s117 = scalar_select %p114, %s115, %s116
    %p120 = pneg %p114
    %p121 = scmp.eq.s32.totalorder %s9, 1
    %p122 = por %p120, %p121
    %p123 = scmp.ne.s32.totalorder %s115, %s118
    %p124 = scmp.eq.s32.totalorder %s9, 0
    %p125 = por %p123, %p124
    %p126 = scmp.ne.s32.totalorder %s115, %s118
    %p127 = scmp.eq.s32.totalorder %s14, 1
    %p128 = por %p126, %p127
    %p129 = scmp.ne.s32.totalorder %s118, %s119
    %p130 = scmp.eq.s32.totalorder %s14, 0
    %p131 = por %p129, %p130
    %p132 = scmp.ne.s32.totalorder %s118, %s119
    %p133 = scmp.eq.s32.totalorder %s15, 1
    %p134 = por %p132, %p133
    %p136 = scmp.ne.s32.totalorder %s119, %s135
    %p137 = scmp.eq.s32.totalorder %s15, 0
    %p138 = por %p136, %p137
    %p139 = scmp.le.s32.totalorder 1, %s9
    %p140 = scmp.lt.s32.totalorder %s9, 3
    %p141 = pnand %p139, %p140
    %p142 = pneg %p141
    // Predicated region
    $region9: #{coord_att_forward.3} parent=5 // pred_check
      _
    $region10: #{coord_att_forward.3} parent=5 // pred_check_branch
      %144 = sbr.rel (%p141) target = $region12
    $region11: #{coord_att_forward.3} parent=5 // pred_region
      %s145 = ssub.s32 %s9, 1
    $region12: #{coord_att_forward.3} parent=5 // pred_fallthru
      _
    %p146 = scmp.lt.s32.totalorder %s9, 2
    // Predicated region
    $region13: #{coord_att_forward.3} parent=5 // pred_check
      %p147 = pneg %p146
    $region14: #{coord_att_forward.3} parent=5 // pred_check_branch
      %149 = sbr.rel (%p147) target = $region16
    $region15: #{coord_att_forward.3} parent=5 // pred_region
      // Predicated region
      $region17: #{coord_att_forward.3} parent=15 // pred_check
        %p150 = pneg %p43
      $region18: #{coord_att_forward.3} parent=15 // pred_check_branch
        %152 = sbr.rel (%p150) target = $region20
      $region19: #{coord_att_forward.3} parent=15 // pred_region
        %p153 = scmp.lt.s32.totalorder %s16, 1
        %s154 = scalar_select %p153, %s16, 1
        %p155 = scmp.lt.s32.totalorder %s17, 0
        %s156 = scalar_select %p155, %s17, 0
        %s157 = smul.addr %s154, 4
        %s158 = sadd.s32 %s156, %s157
        %s159 = smul.addr %s158, 8
        %s160 = scalar_lea.vmem %s0, %s159
      $region20: #{coord_att_forward.3} parent=15 // pred_fallthru
        _
      // Predicated region
      $region21: #{coord_att_forward.3} parent=15 // pred_check
        %p161 = pneg %p71
      $region22: #{coord_att_forward.3} parent=15 // pred_check_branch
        %163 = sbr.rel (%p161) target = $region24
      $region23: #{coord_att_forward.3} parent=15 // pred_region
        %p164 = scmp.lt.s32.totalorder %s16, 1
        %s165 = scalar_select %p164, %s16, 1
        %p166 = scmp.lt.s32.totalorder %s17, 0
        %s167 = scalar_select %p166, %s17, 0
        %s168 = sadd.s32 %s167, %s165
        %s169 = smul.addr %s168, 4
        %s170 = scalar_lea.vmem %s1, %s169
      $region24: #{coord_att_forward.3} parent=15 // pred_fallthru
        _
      // Predicated region
      $region25: #{coord_att_forward.3} parent=15 // pred_check
        %p171 = pneg %p97
      $region26: #{coord_att_forward.3} parent=15 // pred_check_branch
        %173 = sbr.rel (%p171) target = $region28
      $region27: #{coord_att_forward.3} parent=15 // pred_region
        %p174 = scmp.lt.s32.totalorder %s16, 1
        %s175 = scalar_select %p174, %s16, 1
        %s176 = smul.addr %s175, 4
        %s177 = scalar_lea.vmem %s2, %s176
      $region28: #{coord_att_forward.3} parent=15 // pred_fallthru
        _
    $region16: #{coord_att_forward.3} parent=5 // pred_fallthru
      _
    %p178 = scmp.le.s32.totalorder 1, %s9
    %p179 = scmp.lt.s32.totalorder %s9, 3
    %p180 = pnand %p178, %p179
    %p181 = pneg %p180
    // Predicated region
    $region29: #{coord_att_forward.3} parent=5 // pred_check
      _
    $region30: #{coord_att_forward.3} parent=5 // pred_check_branch
      %183 = sbr.rel (%p180) target = $region32
    $region31: #{coord_att_forward.3} parent=5 // pred_region
      %s184 = ssub.s32 %s9, 1
      %p185 = scmp.lt.s32.totalorder %s18, 1
      %s186 = scalar_select %p185, %s18, 1
      %p187 = scmp.lt.s32.totalorder %s19, 0
      %s188 = scalar_select %p187, %s19, 0
      %s189 = smul.addr %s186, 4
      %s190 = sadd.s32 %s188, %s189
      %s191 = smul.addr %s190, 8
      %s192 = scalar_lea.vmem %s0, %s191
      %p193 = pneg %p49
      %p194 = pneg %p46
      %p195 = scmp.lt.s32.totalorder %s18, 1
      %s196 = scalar_select %p195, %s18, 1
      %p197 = scmp.lt.s32.totalorder %s19, 0
      %s198 = scalar_select %p197, %s19, 0
      %s199 = sadd.s32 %s198, %s196
      %s200 = smul.addr %s199, 4
      %s201 = scalar_lea.vmem %s1, %s200
      %p202 = pneg %p77
      %p203 = pneg %p74
      %p204 = scmp.lt.s32.totalorder %s18, 1
      %s205 = scalar_select %p204, %s18, 1
      %s206 = smul.addr %s205, 4
      %s207 = scalar_lea.vmem %s2, %s206
      %p208 = pneg %p103
      %p209 = pneg %p100
      %p210 = pneg %p131
      %p211 = pneg %p128
      %p212 = scmp.lt.s32.totalorder %s18, 1
      %s213 = scalar_select %p212, %s18, 1
      %p214 = scmp.lt.s32.totalorder %s19, 0
      %s215 = scalar_select %p214, %s19, 0
      %s216 = smul.addr %s213, 4
      %s217 = sadd.s32 %s215, %s216
      %s218 = smul.addr %s217, 8
      %s219 = scalar_lea.vmem %s3, %s218
      %p220 = scmp.lt.s32.totalorder %s18, 1
      %s221 = scalar_select %p220, %s18, 1
      %p222 = scmp.lt.s32.totalorder %s19, 0
      %s223 = scalar_select %p222, %s19, 0
      %s224 = smul.addr %s221, 4
      %s225 = sadd.s32 %s223, %s224
      %s226 = smul.addr %s225, 8
      %s227 = scalar_lea.vmem %s0, %s226
      %p228 = scmp.lt.s32.totalorder %s18, 1
      %s229 = scalar_select %p228, %s18, 1
      %p230 = scmp.lt.s32.totalorder %s19, 0
      %s231 = scalar_select %p230, %s19, 0
      %s232 = sadd.s32 %s231, %s229
      %s233 = smul.addr %s232, 4
      %s234 = scalar_lea.vmem %s1, %s233
      %p235 = scmp.lt.s32.totalorder %s18, 1
      %s236 = scalar_select %p235, %s18, 1
      %s237 = smul.addr %s236, 4
      %s238 = scalar_lea.vmem %s2, %s237
      %p239 = scmp.lt.s32.totalorder %s18, 1
      %s240 = scalar_select %p239, %s18, 1
      %p241 = scmp.lt.s32.totalorder %s19, 0
      %s242 = scalar_select %p241, %s19, 0
      %s243 = smul.addr %s240, 4
      %s244 = sadd.s32 %s242, %s243
      %s245 = smul.addr %s244, 8
      %s246 = scalar_lea.vmem %s3, %s245
      %v247 = vld [vmem:[%s227] sm:$0xff]
      %v248 = vld [vmem:[%s227 + $0x8] sm:$0xff]
      %v249 = vld [vmem:[%s227 + $0x10] sm:$0xff]
      %v250 = vld [vmem:[%s227 + $0x18] sm:$0xff]
      %v251 = vld [vmem:[%s234] sm:$0xf]
      %v252 = vld [vmem:[%s238] sm:$0xf]
      %v253 = vlaneseq
      %v254 = vshrl.u32 %v253, 7
      %v255 = vsub.s32 0, %v254
      %v256 = vrot.slane %v251, %v255
      %258 = vbcast.lane.b32.xlu0 %v256, 256
      %v259 = vpop.permute.xlu0 %258
      %v260 = vlaneseq
      %v261 = vshrl.u32 %v260, 7
      %v262 = vsub.s32 1, %v261
      %v263 = vrot.slane %v251, %v262
      %265 = vbcast.lane.b32.xlu0 %v263, 256
      %v266 = vpop.permute.xlu0 %265
      %v267 = vlaneseq
      %v268 = vshrl.u32 %v267, 7
      %v269 = vsub.s32 2, %v268
      %v270 = vrot.slane %v251, %v269
      %272 = vbcast.lane.b32.xlu0 %v270, 256
      %v273 = vpop.permute.xlu0 %272
      %v274 = vlaneseq
      %v275 = vshrl.u32 %v274, 7
      %v276 = vsub.s32 3, %v275
      %v277 = vrot.slane %v251, %v276
      %279 = vbcast.lane.b32.xlu0 %v277, 256
      %v280 = vpop.permute.xlu0 %279
      %v281 = vmul.f32 %v247, %v259
      %v282 = vmul.f32 %v248, %v266
      %v283 = vmul.f32 %v249, %v273
      %v284 = vmul.f32 %v250, %v280
      %v287 = vunpack.c.l.s4 1966171168
      %v288 = vunpack.c.0.s8 %v287
      %v289 = vlaneseq
      %v290 = vshrl.u32 %v289, 7
      %v291 = vsub.s32 %v288, %v290
      %v292 = vrot.slane %v252, %v291
      %v293 = vcombine.high %v292, %v292
      %v295 = vunpack.c.l.s4 1966171168
      %v296 = vunpack.c.0.s8 %v295
      %v297 = vlaneseq
      %v298 = vshrl.u32 %v297, 7
      %v299 = vsub.s32 %v296, %v298
      %v300 = vrot.slane %v292, %v299
      %v302 = vunpack.c.l.s4 1966171168
      %v303 = vunpack.c.0.s8 %v302
      %v304 = vlaneseq
      %v305 = vshrl.u32 %v304, 7
      %v306 = vsub.s32 %v303, %v305
      %v307 = vrot.slane %v293, %v306
      %v308 = vcombine.high %v300, %v300
      %v309 = vcombine.high %v307, %v307
      %v310 = vlaneseq
      %v311 = vshrl.u32 %v310, 7
      %v312 = vsub.s32 0, %v311
      %v313 = vrot.slane %v300, %v312
      %v314 = vlaneseq
      %v315 = vshrl.u32 %v314, 7
      %v316 = vsub.s32 0, %v315
      %v317 = vrot.slane %v307, %v316
      %v318 = vlaneseq
      %v319 = vshrl.u32 %v318, 7
      %v320 = vsub.s32 0, %v319
      %v321 = vrot.slane %v308, %v320
      %v322 = vlaneseq
      %v323 = vshrl.u32 %v322, 7
      %v324 = vsub.s32 0, %v323
      %v325 = vrot.slane %v309, %v324
      %v330 = vmul.f32 %v281, %v313
      %v331 = vmul.f32 %v282, %v317
      %v332 = vmul.f32 %v283, %v321
      %v333 = vmul.f32 %v284, %v325
      %vm334 = vcmask 523264
      %335 = vst.msk [vmem:[%s246] sm:$0xff] %vm334, %v330
      %336 = vst.msk [vmem:[%s246 + $0x8] sm:$0xff] %vm334, %v331
      %337 = vst.msk [vmem:[%s246 + $0x10] sm:$0xff] %vm334, %v332
      %338 = vst.msk [vmem:[%s246 + $0x18] sm:$0xff] %vm334, %v333
      %p339 = scmp.lt.s32.totalorder %s18, 1
      %s340 = scalar_select %p339, %s18, 1
      %p341 = scmp.lt.s32.totalorder %s19, 0
      %s342 = scalar_select %p341, %s19, 0
      %s343 = smul.addr %s340, 4
      %s344 = sadd.s32 %s342, %s343
      %s345 = smul.addr %s344, 8
      %s346 = scalar_lea.vmem %s3, %s345
      // Predicated region
      $region33: #{coord_att_forward.3} parent=31 // pred_check
        %p347 = pneg %p128
      $region34: #{coord_att_forward.3} parent=31 // pred_check_branch
        %349 = sbr.rel (%p347) target = $region36
      $region35: #{coord_att_forward.3} parent=31 // pred_region
        _
      $region36: #{coord_att_forward.3} parent=31 // pred_fallthru
        _
    $region32: #{coord_att_forward.3} parent=5 // pred_fallthru
      _
    %p350 = scmp.le.s32.totalorder 2, %s9
    // Predicated region
    $region37: #{coord_att_forward.3} parent=5 // pred_check
      %p351 = pneg %p350
    $region38: #{coord_att_forward.3} parent=5 // pred_check_branch
      %353 = sbr.rel (%p351) target = $region40
    $region39: #{coord_att_forward.3} parent=5 // pred_region
      %s354 = ssub.s32 %s9, 2
      // Predicated region
      $region41: #{coord_att_forward.3} parent=39 // pred_check
        %p355 = pneg %p134
      $region42: #{coord_att_forward.3} parent=39 // pred_check_branch
        %357 = sbr.rel (%p355) target = $region44
      $region43: #{coord_att_forward.3} parent=39 // pred_region
        %p358 = scmp.lt.s32.totalorder %s20, 1
        %s359 = scalar_select %p358, %s20, 1
        %p360 = scmp.lt.s32.totalorder %s21, 0
        %s361 = scalar_select %p360, %s21, 0
        %s362 = smul.addr %s359, 4
        %s363 = sadd.s32 %s361, %s362
        %s364 = smul.addr %s363, 8
        %s365 = scalar_lea.vmem %s3, %s364
      $region44: #{coord_att_forward.3} parent=39 // pred_fallthru
        _
    $region40: #{coord_att_forward.3} parent=5 // pred_fallthru
      _
  $region6: #{coord_att_forward.3} parent=0 // loop_footer
    %s13 = sadd.s32 1, %s9
  $region7: #{coord_att_forward.3} parent=0 // loop_footer_branch
    %8 = sbr.rel target = $region3
  $region8: #{coord_att_forward.3} parent=0 // loop_exit
    _

// kernel: coord_att_forward.2
$region0: #{coord_att_forward.2}
  #allocation0 [shape = 'u32[]', space=smem, size = 0x4, offset = 0x4, fixed_abs, tag = 'smem constant byte address 0x4 - core index']
  #allocation1 [shape = 'u32[144,128]{1,0:T(1,128)}', space=vmem, size = 0x12000, scoped, tag = 'internal scratch']
  %s0 = inlined_call_operand.vmem [shape: f32[2,4,8,64], index: 0, kind: input, shape index: {}]
  %s1 = inlined_call_operand.vmem [shape: f32[64,16], index: 1, kind: input, shape index: {}]
  %s2 = inlined_call_operand.vmem [shape: f32[2,1,4,8], index: 2, kind: output, shape index: {0}]
  %s3 = inlined_call_operand.vmem [shape: f32[2,1,4,8], index: 3, kind: output, shape index: {1}]
  %s4 = inlined_call_operand.vmem [shape: f32[2,1,4,8], index: 4, kind: output, shape index: {2}]
  %5 = xla_tuple %s2, %s3, %s4
  %s6 = sld [smem:[#allocation0]]
  $region57: #{coord_att_forward.2} parent=0
    _
  %s8 = ssub.s32 1, %s6
  %s9 = scalar_select 0, %s8, %s6
  loop: start=0, step=1, limit=4
  $region2: #{coord_att_forward.2} parent=0 // loop_pre_header
    _
  $region3: #{coord_att_forward.2} parent=0 // loop_header
    %s11 = sphi 0, %s15
    %p12 = scmp.ge.s32.totalorder %s11, 4
    %s18 = sphi 0, %s30
    %s19 = sphi 0, %s26
    %s20 = sphi 0, %s18
    %s21 = sphi 0, %s19
    %s22 = sphi 0, %s20
    %s23 = sphi 0, %s21
    %s35 = sphi 0, %s37
    %s38 = sphi 0, %s35
    %s39 = sphi 0, %s38
    %s55 = sphi 0, %s39
    %s59 = sphi 0, %s59
    %s61 = sphi 0, %s59
    %s62 = sphi 0, %s61
    %s76 = sphi 0, %s62
    %s84 = sphi 0, %s86
    %s87 = sphi 0, %s84
    %s88 = sphi 0, %s87
    %s104 = sphi 0, %s88
    %s112 = sphi 0, %s114
    %s115 = sphi 0, %s112
    %s116 = sphi 0, %s115
    %s132 = sphi 0, %s116
    %s140 = sphi 0, %s142
    %s143 = sphi 0, %s140
    %s144 = sphi 0, %s143
    %s160 = sphi 0, %s144
  $region4: #{coord_att_forward.2} parent=0 // loop_header_branch
    %14 = sbr.rel (%p12) target = $region8
  $region5: #{coord_att_forward.2} parent=0 // loop_body
    %s16 = ssub.s32 %s11, 1
    %s17 = ssub.s32 %s11, 2
    %s24 = sadd.s32 1, %s19
    %p25 = scmp.ge.s32.totalorder %s24, 1
    %s26 = scalar_select %p25, 0, %s24
    %s27 = sadd.s32 1, %s18
    %s28 = scalar_select %p25, %s27, %s18
    %p29 = scmp.ge.s32.totalorder %s28, 2
    %s30 = scalar_select %p29, 0, %s28
    %s31 = ssub.s32 %s18, %s30
    %s32 = ssub.s32 %s19, %s26
    %s33 = sor.u32 %s31, %s32
    %p34 = scmp.eq.s32.totalorder %s33, 0
    %s36 = sadd.s32 %s35, 1
    %s37 = scalar_select %p34, %s35, %s36
    %p40 = pneg %p34
    %p41 = scmp.eq.s32.totalorder %s11, 1
    %p42 = por %p40, %p41
    %p43 = scmp.ne.s32.totalorder %s35, %s38
    %p44 = scmp.eq.s32.totalorder %s11, 0
    %p45 = por %p43, %p44
    %p46 = scmp.ne.s32.totalorder %s35, %s38
    %p47 = scmp.eq.s32.totalorder %s16, 1
    %p48 = por %p46, %p47
    %p49 = scmp.ne.s32.totalorder %s38, %s39
    %p50 = scmp.eq.s32.totalorder %s16, 0
    %p51 = por %p49, %p50
    %p52 = scmp.ne.s32.totalorder %s38, %s39
    %p53 = scmp.eq.s32.totalorder %s17, 1
    %p54 = por %p52, %p53
    %p56 = scmp.ne.s32.totalorder %s39, %s55
    %p57 = scmp.eq.s32.totalorder %s17, 0
    %p58 = por %p56, %p57
    %s60 = sadd.s32 %s59, 1
    %p63 = scmp.eq.s32.totalorder %s11, 1
    %p64 = scmp.ne.s32.totalorder %s59, %s61
    %p65 = scmp.eq.s32.totalorder %s11, 0
    %p66 = por %p64, %p65
    %p67 = scmp.ne.s32.totalorder %s59, %s61
    %p68 = scmp.eq.s32.totalorder %s16, 1
    %p69 = por %p67, %p68
    %p70 = scmp.ne.s32.totalorder %s61, %s62
    %p71 = scmp.eq.s32.totalorder %s16, 0
    %p72 = por %p70, %p71
    %p73 = scmp.ne.s32.totalorder %s61, %s62
    %p74 = scmp.eq.s32.totalorder %s17, 1
    %p75 = por %p73, %p74
    %p77 = scmp.ne.s32.totalorder %s62, %s76
    %p78 = scmp.eq.s32.totalorder %s17, 0
    %p79 = por %p77, %p78
    %s80 = ssub.s32 %s18, %s30
    %s81 = ssub.s32 %s19, %s26
    %s82 = sor.u32 %s80, %s81
    %p83 = scmp.eq.s32.totalorder %s82, 0
    %s85 = sadd.s32 %s84, 1
    %s86 = scalar_select %p83, %s84, %s85
    %p89 = pneg %p83
    %p90 = scmp.eq.s32.totalorder %s11, 1
    %p91 = por %p89, %p90
    %p92 = scmp.ne.s32.totalorder %s84, %s87
    %p93 = scmp.eq.s32.totalorder %s11, 0
    %p94 = por %p92, %p93
    %p95 = scmp.ne.s32.totalorder %s84, %s87
    %p96 = scmp.eq.s32.totalorder %s16, 1
    %p97 = por %p95, %p96
    %p98 = scmp.ne.s32.totalorder %s87, %s88
    %p99 = scmp.eq.s32.totalorder %s16, 0
    %p100 = por %p98, %p99
    %p101 = scmp.ne.s32.totalorder %s87, %s88
    %p102 = scmp.eq.s32.totalorder %s17, 1
    %p103 = por %p101, %p102
    %p105 = scmp.ne.s32.totalorder %s88, %s104
    %p106 = scmp.eq.s32.totalorder %s17, 0
    %p107 = por %p105, %p106
    %s108 = ssub.s32 %s18, %s30
    %s109 = ssub.s32 %s19, %s26
    %s110 = sor.u32 %s108, %s109
    %p111 = scmp.eq.s32.totalorder %s110, 0
    %s113 = sadd.s32 %s112, 1
    %s114 = scalar_select %p111, %s112, %s113
    %p117 = pneg %p111
    %p118 = scmp.eq.s32.totalorder %s11, 1
    %p119 = por %p117, %p118
    %p120 = scmp.ne.s32.totalorder %s112, %s115
    %p121 = scmp.eq.s32.totalorder %s11, 0
    %p122 = por %p120, %p121
    %p123 = scmp.ne.s32.totalorder %s112, %s115
    %p124 = scmp.eq.s32.totalorder %s16, 1
    %p125 = por %p123, %p124
    %p126 = scmp.ne.s32.totalorder %s115, %s116
    %p127 = scmp.eq.s32.totalorder %s16, 0
    %p128 = por %p126, %p127
    %p129 = scmp.ne.s32.totalorder %s115, %s116
    %p130 = scmp.eq.s32.totalorder %s17, 1
    %p131 = por %p129, %p130
    %p133 = scmp.ne.s32.totalorder %s116, %s132
    %p134 = scmp.eq.s32.totalorder %s17, 0
    %p135 = por %p133, %p134
    %s136 = ssub.s32 %s18, %s30
    %s137 = ssub.s32 %s19, %s26
    %s138 = sor.u32 %s136, %s137
    %p139 = scmp.eq.s32.totalorder %s138, 0
    %s141 = sadd.s32 %s140, 1
    %s142 = scalar_select %p139, %s140, %s141
    %p145 = pneg %p139
    %p146 = scmp.eq.s32.totalorder %s11, 1
    %p147 = por %p145, %p146
    %p148 = scmp.ne.s32.totalorder %s140, %s143
    %p149 = scmp.eq.s32.totalorder %s11, 0
    %p150 = por %p148, %p149
    %p151 = scmp.ne.s32.totalorder %s140, %s143
    %p152 = scmp.eq.s32.totalorder %s16, 1
    %p153 = por %p151, %p152
    %p154 = scmp.ne.s32.totalorder %s143, %s144
    %p155 = scmp.eq.s32.totalorder %s16, 0
    %p156 = por %p154, %p155
    %p157 = scmp.ne.s32.totalorder %s143, %s144
    %p158 = scmp.eq.s32.totalorder %s17, 1
    %p159 = por %p157, %p158
    %p161 = scmp.ne.s32.totalorder %s144, %s160
    %p162 = scmp.eq.s32.totalorder %s17, 0
    %p163 = por %p161, %p162
    %p164 = scmp.le.s32.totalorder 1, %s11
    %p165 = scmp.lt.s32.totalorder %s11, 3
    %p166 = pnand %p164, %p165
    %p167 = pneg %p166
    // Predicated region
    $region9: #{coord_att_forward.2} parent=5 // pred_check
      _
    $region10: #{coord_att_forward.2} parent=5 // pred_check_branch
      %169 = sbr.rel (%p166) target = $region12
    $region11: #{coord_att_forward.2} parent=5 // pred_region
      %s170 = ssub.s32 %s11, 1
      // Predicated region
      $region13: #{coord_att_forward.2} parent=11 // pred_check
        %p171 = pneg %p72
      $region14: #{coord_att_forward.2} parent=11 // pred_check_branch
        %173 = sbr.rel (%p171) target = $region16
      $region15: #{coord_att_forward.2} parent=11 // pred_region
        _
      $region16: #{coord_att_forward.2} parent=11 // pred_fallthru
        _
    $region12: #{coord_att_forward.2} parent=5 // pred_fallthru
      _
    %p174 = scmp.lt.s32.totalorder %s11, 2
    // Predicated region
    $region17: #{coord_att_forward.2} parent=5 // pred_check
      %p175 = pneg %p174
    $region18: #{coord_att_forward.2} parent=5 // pred_check_branch
      %177 = sbr.rel (%p175) target = $region20
    $region19: #{coord_att_forward.2} parent=5 // pred_region
      // Predicated region
      $region21: #{coord_att_forward.2} parent=19 // pred_check
        %p178 = pneg %p45
      $region22: #{coord_att_forward.2} parent=19 // pred_check_branch
        %180 = sbr.rel (%p178) target = $region24
      $region23: #{coord_att_forward.2} parent=19 // pred_region
        %p181 = scmp.lt.s32.totalorder %s18, 1
        %s182 = scalar_select %p181, %s18, 1
        %p183 = scmp.lt.s32.totalorder %s19, 0
        %s184 = scalar_select %p183, %s19, 0
        %s185 = smul.addr %s182, 4
        %s186 = sadd.s32 %s184, %s185
        %s187 = smul.addr %s186, 8
        %s188 = scalar_lea.vmem %s0, %s187
      $region24: #{coord_att_forward.2} parent=19 // pred_fallthru
        _
    $region20: #{coord_att_forward.2} parent=5 // pred_fallthru
      _
    %p189 = scmp.le.s32.totalorder 1, %s11
    %p190 = scmp.lt.s32.totalorder %s11, 3
    %p191 = pnand %p189, %p190
    %p192 = pneg %p191
    // Predicated region
    $region25: #{coord_att_forward.2} parent=5 // pred_check
      _
    $region26: #{coord_att_forward.2} parent=5 // pred_check_branch
      %194 = sbr.rel (%p191) target = $region28
    $region27: #{coord_att_forward.2} parent=5 // pred_region
      %s195 = ssub.s32 %s11, 1
      %p196 = scmp.lt.s32.totalorder %s20, 1
      %s197 = scalar_select %p196, %s20, 1
      %p198 = scmp.lt.s32.totalorder %s21, 0
      %s199 = scalar_select %p198, %s21, 0
      %s200 = smul.addr %s197, 4
      %s201 = sadd.s32 %s199, %s200
      %s202 = smul.addr %s201, 8
      %s203 = scalar_lea.vmem %s0, %s202
      %p204 = pneg %p51
      %p205 = pneg %p48
      %p206 = pneg %p72
      %p207 = pneg %p69
      %p208 = pneg %p100
      %p209 = pneg %p97
      %p210 = scmp.lt.s32.totalorder %s20, 1
      %s211 = scalar_select %p210, %s20, 1
      %p212 = scmp.lt.s32.totalorder %s21, 0
      %s213 = scalar_select %p212, %s21, 0
      %s214 = sadd.s32 %s213, %s211
      %s215 = smul.addr %s214, 4
      %s216 = scalar_lea.vmem %s2, %s215
      %p217 = pneg %p128
      %p218 = pneg %p125
      %p219 = scmp.lt.s32.totalorder %s20, 1
      %s220 = scalar_select %p219, %s20, 1
      %p221 = scmp.lt.s32.totalorder %s21, 0
      %s222 = scalar_select %p221, %s21, 0
      %s223 = sadd.s32 %s222, %s220
      %s224 = smul.addr %s223, 4
      %s225 = scalar_lea.vmem %s3, %s224
      %p226 = pneg %p156
      %p227 = pneg %p153
      %p228 = scmp.lt.s32.totalorder %s20, 1
      %s229 = scalar_select %p228, %s20, 1
      %p230 = scmp.lt.s32.totalorder %s21, 0
      %s231 = scalar_select %p230, %s21, 0
      %s232 = sadd.s32 %s231, %s229
      %s233 = smul.addr %s232, 4
      %s234 = scalar_lea.vmem %s4, %s233
      %p235 = scmp.lt.s32.totalorder %s20, 1
      %s236 = scalar_select %p235, %s20, 1
      %p237 = scmp.lt.s32.totalorder %s21, 0
      %s238 = scalar_select %p237, %s21, 0
      %s239 = smul.addr %s236, 4
      %s240 = sadd.s32 %s238, %s239
      %s241 = smul.addr %s240, 8
      %s242 = scalar_lea.vmem %s0, %s241
      %p243 = scmp.lt.s32.totalorder %s20, 1
      %s244 = scalar_select %p243, %s20, 1
      %p245 = scmp.lt.s32.totalorder %s21, 0
      %s246 = scalar_select %p245, %s21, 0
      %s247 = sadd.s32 %s246, %s244
      %s248 = smul.addr %s247, 4
      %s249 = scalar_lea.vmem %s2, %s248
      %p250 = scmp.lt.s32.totalorder %s20, 1
      %s251 = scalar_select %p250, %s20, 1
      %p252 = scmp.lt.s32.totalorder %s21, 0
      %s253 = scalar_select %p252, %s21, 0
      %s254 = sadd.s32 %s253, %s251
      %s255 = smul.addr %s254, 4
      %s256 = scalar_lea.vmem %s3, %s255
      %p257 = scmp.lt.s32.totalorder %s20, 1
      %s258 = scalar_select %p257, %s20, 1
      %p259 = scmp.lt.s32.totalorder %s21, 0
      %s260 = scalar_select %p259, %s21, 0
      %s261 = sadd.s32 %s260, %s258
      %s262 = smul.addr %s261, 4
      %s263 = scalar_lea.vmem %s4, %s262
      %v264 = vld [vmem:[%s242] sm:$0xff]
      %v265 = vld [vmem:[%s242 + $0x8] sm:$0xff]
      %v266 = vld [vmem:[%s242 + $0x10] sm:$0xff]
      %v267 = vld [vmem:[%s242 + $0x18] sm:$0xff]
      %v268 = vld [vmem:[%s1] sm:$0xff]
      %v269 = vld [vmem:[%s1 + $0x8] sm:$0xff]
      %v270 = vld [vmem:[%s1 + $0x10] sm:$0xff]
      %v271 = vld [vmem:[%s1 + $0x18] sm:$0xff]
      %v272 = vld [vmem:[%s1 + $0x20] sm:$0xff]
      %v273 = vld [vmem:[%s1 + $0x28] sm:$0xff]
      %v274 = vld [vmem:[%s1 + $0x30] sm:$0xff]
      %v275 = vld [vmem:[%s1 + $0x38] sm:$0xff]
      %vm276 = vcmask 523264
      %v278 = vsel %vm276, %v264, 0
      %v281 = vsel %vm276, %v265, 0
      %v284 = vsel %vm276, %v266, 0
      %v287 = vsel %vm276, %v267, 0
      %289 = vmatprep.subr.mxu0 0.0
      %v290 = vand.u32 %v268, 4294901760
      %291 = vmatpush1.msra.mxu0 %v290
      %292 = vmatprep.subr.mxu0 0.0
      %v293 = vand.u32 %v269, 4294901760
      %294 = vmatpush1.msra.mxu0 %v293
      %295 = vmatprep.subr.mxu0 0.0
      %v296 = vand.u32 %v270, 4294901760
      %297 = vmatpush1.msra.mxu0 %v296
      %298 = vmatprep.subr.mxu0 0.0
      %v299 = vand.u32 %v271, 4294901760
      %300 = vmatpush1.msra.mxu0 %v299
      %301 = vmatprep.subr.mxu0 0.0
      %v302 = vand.u32 %v272, 4294901760
      %303 = vmatpush1.msra.mxu0 %v302
      %304 = vmatprep.subr.mxu0 0.0
      %v305 = vand.u32 %v273, 4294901760
      %306 = vmatpush1.msra.mxu0 %v305
      %307 = vmatprep.subr.mxu0 0.0
      %v308 = vand.u32 %v274, 4294901760
      %309 = vmatpush1.msra.mxu0 %v308
      %310 = vmatprep.subr.mxu0 0.0
      %v311 = vand.u32 %v275, 4294901760
      %312 = vmatpush1.msra.mxu0 %v311
      %313 = vmatprep.subr.mxu0 0.0
      %314 = vmatpush1.msra.mxu0 0.0
      %315 = vmatprep.subr.mxu0 0.0
      %316 = vmatpush1.msra.mxu0 0.0
      %317 = vmatprep.subr.mxu0 0.0
      %318 = vmatpush1.msra.mxu0 0.0
      %319 = vmatprep.subr.mxu0 0.0
      %320 = vmatpush1.msra.mxu0 0.0
      %321 = vmatprep.subr.mxu0 0.0
      %322 = vmatpush1.msra.mxu0 0.0
      %323 = vmatprep.subr.mxu0 0.0
      %324 = vmatpush1.msra.mxu0 0.0
      %325 = vmatprep.subr.mxu0 0.0
      %326 = vmatpush1.msra.mxu0 0.0
      %327 = vmatprep.subr.mxu0 0.0
      %328 = vmatpush1.msra.mxu0 0.0
      %329 = vmatprep.subr.mxu0 0.0
      %330 = vmatpush1.msra.mxu0 0.0
      %331 = vmatprep.subr.mxu0 0.0
      %332 = vmatpush1.msra.mxu0 0.0
      %333 = vmatprep.subr.mxu0 0.0
      %334 = vmatpush1.msra.mxu0 0.0
      %335 = vmatprep.subr.mxu0 0.0
      %336 = vmatpush1.msra.mxu0 0.0
      %337 = vmatprep.subr.mxu0 0.0
      %338 = vmatpush1.msra.mxu0 0.0
      %339 = vmatprep.subr.mxu0 0.0
      %340 = vmatpush1.msra.mxu0 0.0
      %341 = vmatprep.subr.mxu0 0.0
      %342 = vmatpush1.msra.mxu0 0.0
      %343 = vmatprep.subr.mxu0 0.0
      %344 = vmatpush1.msra.mxu0 0.0
      %345 = vmatprep.subr.mxu0 0.0
      %346 = vmatpush1.msra.mxu0 0.0
      %347 = vmatprep.subr.mxu0 0.0
      %348 = vmatpush1.msra.mxu0 0.0
      %349 = vmatprep.subr.mxu0 0.0
      %350 = vmatpush1.msra.mxu0 0.0
      %351 = vmatprep.subr.mxu0 0.0
      %352 = vmatpush1.msra.mxu0 0.0
      %353 = vmatprep.subr.mxu0 0.0
      %354 = vmatpush1.msra.mxu0 0.0
      %355 = vmatprep.subr.mxu0 0.0
      %356 = vmatpush1.msra.mxu0 0.0
      %357 = vmatprep.subr.mxu0 0.0
      %358 = vmatpush1.msra.mxu0 0.0
      %359 = vmatprep.subr.mxu0 0.0
      %360 = vmatpush1.msra.mxu0 0.0
      %361 = vmatprep.mubr.f32.mxu0 0.0
      %v362 = vand.u32 %v278, 4294901760
      %v363 = vsub.f32 %v278, %v362
      %v364 = vand.u32 %v363, 4294901760
      %v365 = vsub.f32 %v363, %v364
      %v366 = vand.u32 %v365, 4294901760
      %367 = vmatmul.mubr.f32.gmra.mrb[0].mxu0 %v366
      %v368 = vpop.f32.mrb[0].mxu0
      %v369 = vadd.f32 0.0, %v368
      %v370 = vpop.f32.mrb[0].mxu0
      %371 = vmatprep.mubr.f32.mxu0 0.0
      %v372 = vand.u32 %v281, 4294901760
      %v373 = vsub.f32 %v281, %v372
      %v374 = vand.u32 %v373, 4294901760
      %v375 = vsub.f32 %v373, %v374
      %v376 = vand.u32 %v375, 4294901760
      %377 = vmatmul.mubr.f32.gmra.mrb[0].mxu0 %v376
      %v378 = vpop.f32.mrb[0].mxu0
      %v379 = vadd.f32 0.0, %v378
      %v380 = vpop.f32.mrb[0].mxu0
      %381 = vmatprep.mubr.f32.mxu0 0.0
      %v382 = vand.u32 %v284, 4294901760
      %v383 = vsub.f32 %v284, %v382
      %v384 = vand.u32 %v383, 4294901760
      %v385 = vsub.f32 %v383, %v384
      %v386 = vand.u32 %v385, 4294901760
      %387 = vmatmul.mubr.f32.gmra.mrb[0].mxu0 %v386
      %v388 = vpop.f32.mrb[0].mxu0
      %v389 = vadd.f32 0.0, %v388
      %v390 = vpop.f32.mrb[0].mxu0
      %391 = vmatprep.mubr.f32.mxu0 0.0
      %v392 = vand.u32 %v287, 4294901760
      %v393 = vsub.f32 %v287, %v392
      %v394 = vand.u32 %v393, 4294901760
      %v395 = vsub.f32 %v393, %v394
      %v396 = vand.u32 %v395, 4294901760
      %397 = vmatmul.mubr.f32.gmra.mrb[0].mxu0 %v396
      %v398 = vpop.f32.mrb[0].mxu0
      %v399 = vadd.f32 0.0, %v398
      %v400 = vpop.f32.mrb[0].mxu0
      %401 = vdwg.mxu0
      %402 = vmatprep.subr.mxu0 0.0
      %v403 = vand.u32 %v268, 4294901760
      %v404 = vsub.f32 %v268, %v403
      %v405 = vand.u32 %v404, 4294901760
      %v406 = vsub.f32 %v404, %v405
      %v407 = vand.u32 %v406, 4294901760
      %408 = vmatpush1.msra.mxu0 %v407
      %409 = vmatprep.subr.mxu0 0.0
      %v410 = vand.u32 %v269, 4294901760
      %v411 = vsub.f32 %v269, %v410
      %v412 = vand.u32 %v411, 4294901760
      %v413 = vsub.f32 %v411, %v412
      %v414 = vand.u32 %v413, 4294901760
      %415 = vmatpush1.msra.mxu0 %v414
      %416 = vmatprep.subr.mxu0 0.0
      %v417 = vand.u32 %v270, 4294901760
      %v418 = vsub.f32 %v270, %v417
      %v419 = vand.u32 %v418, 4294901760
      %v420 = vsub.f32 %v418, %v419
      %v421 = vand.u32 %v420, 4294901760
      %422 = vmatpush1.msra.mxu0 %v421
      %423 = vmatprep.subr.mxu0 0.0
      %v424 = vand.u32 %v271, 4294901760
      %v425 = vsub.f32 %v271, %v424
      %v426 = vand.u32 %v425, 4294901760
      %v427 = vsub.f32 %v425, %v426
      %v428 = vand.u32 %v427, 4294901760
      %429 = vmatpush1.msra.mxu0 %v428
      %430 = vmatprep.subr.mxu0 0.0
      %v431 = vand.u32 %v272, 4294901760
      %v432 = vsub.f32 %v272, %v431
      %v433 = vand.u32 %v432, 4294901760
      %v434 = vsub.f32 %v432, %v433
      %v435 = vand.u32 %v434, 4294901760
      %436 = vmatpush1.msra.mxu0 %v435
      %437 = vmatprep.subr.mxu0 0.0
      %v438 = vand.u32 %v273, 4294901760
      %v439 = vsub.f32 %v273, %v438
      %v440 = vand.u32 %v439, 4294901760
      %v441 = vsub.f32 %v439, %v440
      %v442 = vand.u32 %v441, 4294901760
      %443 = vmatpush1.msra.mxu0 %v442
      %444 = vmatprep.subr.mxu0 0.0
      %v445 = vand.u32 %v274, 4294901760
      %v446 = vsub.f32 %v274, %v445
      %v447 = vand.u32 %v446, 4294901760
      %v448 = vsub.f32 %v446, %v447
      %v449 = vand.u32 %v448, 4294901760
      %450 = vmatpush1.msra.mxu0 %v449
      %451 = vmatprep.subr.mxu0 0.0
      %v452 = vand.u32 %v275, 4294901760
      %v453 = vsub.f32 %v275, %v452
      %v454 = vand.u32 %v453, 4294901760
      %v455 = vsub.f32 %v453, %v454
      %v456 = vand.u32 %v455, 4294901760
      %457 = vmatpush1.msra.mxu0 %v456
      %458 = vmatprep.subr.mxu0 0.0
      %459 = vmatpush1.msra.mxu0 0.0
      %460 = vmatprep.subr.mxu0 0.0
      %461 = vmatpush1.msra.mxu0 0.0
      %462 = vmatprep.subr.mxu0 0.0
      %463 = vmatpush1.msra.mxu0 0.0
      %464 = vmatprep.subr.mxu0 0.0
      %465 = vmatpush1.msra.mxu0 0.0
      %466 = vmatprep.subr.mxu0 0.0
      %467 = vmatpush1.msra.mxu0 0.0
      %468 = vmatprep.subr.mxu0 0.0
      %469 = vmatpush1.msra.mxu0 0.0
      %470 = vmatprep.subr.mxu0 0.0
      %471 = vmatpush1.msra.mxu0 0.0
      %472 = vmatprep.subr.mxu0 0.0
      %473 = vmatpush1.msra.mxu0 0.0
      %474 = vmatprep.subr.mxu0 0.0
      %475 = vmatpush1.msra.mxu0 0.0
      %476 = vmatprep.subr.mxu0 0.0
      %477 = vmatpush1.msra.mxu0 0.0
      %478 = vmatprep.subr.mxu0 0.0
      %479 = vmatpush1.msra.mxu0 0.0
      %480 = vmatprep.subr.mxu0 0.0
      %481 = vmatpush1.msra.mxu0 0.0
      %482 = vmatprep.subr.mxu0 0.0
      %483 = vmatpush1.msra.mxu0 0.0
      %484 = vmatprep.subr.mxu0 0.0
      %485 = vmatpush1.msra.mxu0 0.0
      %486 = vmatprep.subr.mxu0 0.0
      %487 = vmatpush1.msra.mxu0 0.0
      %488 = vmatprep.subr.mxu0 0.0
      %489 = vmatpush1.msra.mxu0 0.0
      %490 = vmatprep.subr.mxu0 0.0
      %491 = vmatpush1.msra.mxu0 0.0
      %492 = vmatprep.subr.mxu0 0.0
      %493 = vmatpush1.msra.mxu0 0.0
      %494 = vmatprep.subr.mxu0 0.0
      %495 = vmatpush1.msra.mxu0 0.0
      %496 = vmatprep.subr.mxu0 0.0
      %497 = vmatpush1.msra.mxu0 0.0
      %498 = vmatprep.subr.mxu0 0.0
      %499 = vmatpush1.msra.mxu0 0.0
      %500 = vmatprep.subr.mxu0 0.0
      %501 = vmatpush1.msra.mxu0 0.0
      %502 = vmatprep.subr.mxu0 0.0
      %503 = vmatpush1.msra.mxu0 0.0
      %504 = vmatprep.subr.mxu0 0.0
      %505 = vmatpush1.msra.mxu0 0.0
      %506 = vmatprep.mubr.f32.mxu0 0.0
      %v507 = vand.u32 %v278, 4294901760
      %508 = vmatmul.mubr.f32.gmra.mrb[0].mxu0 %v507
      %v509 = vpop.f32.mrb[0].mxu0
      %v510 = vadd.f32 %v369, %v509
      %v511 = vpop.f32.mrb[0].mxu0
      %512 = vmatprep.mubr.f32.mxu0 0.0
      %v513 = vand.u32 %v281, 4294901760
      %514 = vmatmul.mubr.f32.gmra.mrb[0].mxu0 %v513
      %v515 = vpop.f32.mrb[0].mxu0
      %v516 = vadd.f32 %v379, %v515
      %v517 = vpop.f32.mrb[0].mxu0
      %518 = vmatprep.mubr.f32.mxu0 0.0
      %v519 = vand.u32 %v284, 4294901760
      %520 = vmatmul.mubr.f32.gmra.mrb[0].mxu0 %v519
      %v521 = vpop.f32.mrb[0].mxu0
      %v522 = vadd.f32 %v389, %v521
      %v523 = vpop.f32.mrb[0].mxu0
      %524 = vmatprep.mubr.f32.mxu0 0.0
      %v525 = vand.u32 %v287, 4294901760
      %526 = vmatmul.mubr.f32.gmra.mrb[0].mxu0 %v525
      %v527 = vpop.f32.mrb[0].mxu0
      %v528 = vadd.f32 %v399, %v527
      %v529 = vpop.f32.mrb[0].mxu0
      %530 = vdwg.mxu0
      %531 = vmatprep.subr.mxu0 0.0
      %v532 = vand.u32 %v268, 4294901760
      %v533 = vsub.f32 %v268, %v532
      %534 = vmatpush1.msra.mxu0 %v533
      %535 = vmatprep.subr.mxu0 0.0
      %v536 = vand.u32 %v269, 4294901760
      %v537 = vsub.f32 %v269, %v536
      %538 = vmatpush1.msra.mxu0 %v537
      %539 = vmatprep.subr.mxu0 0.0
      %v540 = vand.u32 %v270, 4294901760
      %v541 = vsub.f32 %v270, %v540
      %542 = vmatpush1.msra.mxu0 %v541
      %543 = vmatprep.subr.mxu0 0.0
      %v544 = vand.u32 %v271, 4294901760
      %v545 = vsub.f32 %v271, %v544
      %546 = vmatpush1.msra.mxu0 %v545
      %547 = vmatprep.subr.mxu0 0.0
      %v548 = vand.u32 %v272, 4294901760
      %v549 = vsub.f32 %v272, %v548
      %550 = vmatpush1.msra.mxu0 %v549
      %551 = vmatprep.subr.mxu0 0.0
      %v552 = vand.u32 %v273, 4294901760
      %v553 = vsub.f32 %v273, %v552
      %554 = vmatpush1.msra.mxu0 %v553
      %555 = vmatprep.subr.mxu0 0.0
      %v556 = vand.u32 %v274, 4294901760
      %v557 = vsub.f32 %v274, %v556
      %558 = vmatpush1.msra.mxu0 %v557
      %559 = vmatprep.subr.mxu0 0.0
      %v560 = vand.u32 %v275, 4294901760
      %v561 = vsub.f32 %v275, %v560
      %562 = vmatpush1.msra.mxu0 %v561
      %563 = vmatprep.subr.mxu0 0.0
      %564 = vmatpush1.msra.mxu0 0.0
      %565 = vmatprep.subr.mxu0 0.0
      %566 = vmatpush1.msra.mxu0 0.0
      %567 = vmatprep.subr.mxu0 0.0
      %568 = vmatpush1.msra.mxu0 0.0
      %569 = vmatprep.subr.mxu0 0.0
      %570 = vmatpush1.msra.mxu0 0.0
      %571 = vmatprep.subr.mxu0 0.0
      %572 = vmatpush1.msra.mxu0 0.0
      %573 = vmatprep.subr.mxu0 0.0
      %574 = vmatpush1.msra.mxu0 0.0
      %575 = vmatprep.subr.mxu0 0.0
      %576 = vmatpush1.msra.mxu0 0.0
      %577 = vmatprep.subr.mxu0 0.0
      %578 = vmatpush1.msra.mxu0 0.0
      %579 = vmatprep.subr.mxu0 0.0
      %580 = vmatpush1.msra.mxu0 0.0
      %581 = vmatprep.subr.mxu0 0.0
      %582 = vmatpush1.msra.mxu0 0.0
      %583 = vmatprep.subr.mxu0 0.0
      %584 = vmatpush1.msra.mxu0 0.0
      %585 = vmatprep.subr.mxu0 0.0
      %586 = vmatpush1.msra.mxu0 0.0
      %587 = vmatprep.subr.mxu0 0.0
      %588 = vmatpush1.msra.mxu0 0.0
      %589 = vmatprep.subr.mxu0 0.0
      %590 = vmatpush1.msra.mxu0 0.0
      %591 = vmatprep.subr.mxu0 0.0
      %592 = vmatpush1.msra.mxu0 0.0
      %593 = vmatprep.subr.mxu0 0.0
      %594 = vmatpush1.msra.mxu0 0.0
      %595 = vmatprep.subr.mxu0 0.0
      %596 = vmatpush1.msra.mxu0 0.0
      %597 = vmatprep.subr.mxu0 0.0
      %598 = vmatpush1.msra.mxu0 0.0
      %599 = vmatprep.subr.mxu0 0.0
      %600 = vmatpush1.msra.mxu0 0.0
      %601 = vmatprep.subr.mxu0 0.0
      %602 = vmatpush1.msra.mxu0 0.0
      %603 = vmatprep.subr.mxu0 0.0
      %604 = vmatpush1.msra.mxu0 0.0
      %605 = vmatprep.subr.mxu0 0.0
      %606 = vmatpush1.msra.mxu0 0.0
      %607 = vmatprep.subr.mxu0 0.0
      %608 = vmatpush1.msra.mxu0 0.0
      %609 = vmatprep.subr.mxu0 0.0
      %610 = vmatpush1.msra.mxu0 0.0
      %611 = vmatprep.mubr.f32.mxu0 0.0
      %v612 = vand.u32 %v278, 4294901760
      %v613 = vsub.f32 %v278, %v612
      %614 = vmatmul.mubr.f32.gmra.mrb[0].mxu0 %v613
      %v615 = vpop.f32.mrb[0].mxu0
      %v616 = vadd.f32 %v510, %v615
      %v617 = vpop.f32.mrb[0].mxu0
      %618 = vmatprep.mubr.f32.mxu0 0.0
      %v619 = vand.u32 %v281, 4294901760
      %v620 = vsub.f32 %v281, %v619
      %621 = vmatmul.mubr.f32.gmra.mrb[0].mxu0 %v620
      %v622 = vpop.f32.mrb[0].mxu0
      %v623 = vadd.f32 %v516, %v622
      %v624 = vpop.f32.mrb[0].mxu0
      %625 = vmatprep.mubr.f32.mxu0 0.0
      %v626 = vand.u32 %v284, 4294901760
      %v627 = vsub.f32 %v284, %v626
      %628 = vmatmul.mubr.f32.gmra.mrb[0].mxu0 %v627
      %v629 = vpop.f32.mrb[0].mxu0
      %v630 = vadd.f32 %v522, %v629
      %v631 = vpop.f32.mrb[0].mxu0
      %632 = vmatprep.mubr.f32.mxu0 0.0
      %v633 = vand.u32 %v287, 4294901760
      %v634 = vsub.f32 %v287, %v633
      %635 = vmatmul.mubr.f32.gmra.mrb[0].mxu0 %v634
      %v636 = vpop.f32.mrb[0].mxu0
      %v637 = vadd.f32 %v528, %v636
      %v638 = vpop.f32.mrb[0].mxu0
      %639 = vdwg.mxu0
      %640 = vmatprep.subr.mxu0 0.0
      %v641 = vand.u32 %v268, 4294901760
      %642 = vmatpush1.msra.mxu0 %v641
      %643 = vmatprep.subr.mxu0 0.0
      %v644 = vand.u32 %v269, 4294901760
      %645 = vmatpush1.msra.mxu0 %v644
      %646 = vmatprep.subr.mxu0 0.0
      %v647 = vand.u32 %v270, 4294901760
      %648 = vmatpush1.msra.mxu0 %v647
      %649 = vmatprep.subr.mxu0 0.0
      %v650 = vand.u32 %v271, 4294901760
      %651 = vmatpush1.msra.mxu0 %v650
      %652 = vmatprep.subr.mxu0 0.0
      %v653 = vand.u32 %v272, 4294901760
      %654 = vmatpush1.msra.mxu0 %v653
      %655 = vmatprep.subr.mxu0 0.0
      %v656 = vand.u32 %v273, 4294901760
      %657 = vmatpush1.msra.mxu0 %v656
      %658 = vmatprep.subr.mxu0 0.0
      %v659 = vand.u32 %v274, 4294901760
      %660 = vmatpush1.msra.mxu0 %v659
      %661 = vmatprep.subr.mxu0 0.0
      %v662 = vand.u32 %v275, 4294901760
      %663 = vmatpush1.msra.mxu0 %v662
      %664 = vmatprep.subr.mxu0 0.0
      %665 = vmatpush1.msra.mxu0 0.0
      %666 = vmatprep.subr.mxu0 0.0
      %667 = vmatpush1.msra.mxu0 0.0
      %668 = vmatprep.subr.mxu0 0.0
      %669 = vmatpush1.msra.mxu0 0.0
      %670 = vmatprep.subr.mxu0 0.0
      %671 = vmatpush1.msra.mxu0 0.0
      %672 = vmatprep.subr.mxu0 0.0
      %673 = vmatpush1.msra.mxu0 0.0
      %674 = vmatprep.subr.mxu0 0.0
      %675 = vmatpush1.msra.mxu0 0.0
      %676 = vmatprep.subr.mxu0 0.0
      %677 = vmatpush1.msra.mxu0 0.0
      %678 = vmatprep.subr.mxu0 0.0
      %679 = vmatpush1.msra.mxu0 0.0
      %680 = vmatprep.subr.mxu0 0.0
      %681 = vmatpush1.msra.mxu0 0.0
      %682 = vmatprep.subr.mxu0 0.0
      %683 = vmatpush1.msra.mxu0 0.0
      %684 = vmatprep.subr.mxu0 0.0
      %685 = vmatpush1.msra.mxu0 0.0
      %686 = vmatprep.subr.mxu0 0.0
      %687 = vmatpush1.msra.mxu0 0.0
      %688 = vmatprep.subr.mxu0 0.0
      %689 = vmatpush1.msra.mxu0 0.0
      %690 = vmatprep.subr.mxu0 0.0
      %691 = vmatpush1.msra.mxu0 0.0
      %692 = vmatprep.subr.mxu0 0.0
      %693 = vmatpush1.msra.mxu0 0.0
      %694 = vmatprep.subr.mxu0 0.0
      %695 = vmatpush1.msra.mxu0 0.0
      %696 = vmatprep.subr.mxu0 0.0
      %697 = vmatpush1.msra.mxu0 0.0
      %698 = vmatprep.subr.mxu0 0.0
      %699 = vmatpush1.msra.mxu0 0.0
      %700 = vmatprep.subr.mxu0 0.0
      %701 = vmatpush1.msra.mxu0 0.0
      %702 = vmatprep.subr.mxu0 0.0
      %703 = vmatpush1.msra.mxu0 0.0
      %704 = vmatprep.subr.mxu0 0.0
      %705 = vmatpush1.msra.mxu0 0.0
      %706 = vmatprep.subr.mxu0 0.0
      %707 = vmatpush1.msra.mxu0 0.0
      %708 = vmatprep.subr.mxu0 0.0
      %709 = vmatpush1.msra.mxu0 0.0
      %710 = vmatprep.subr.mxu0 0.0
      %711 = vmatpush1.msra.mxu0 0.0
      %712 = vmatprep.mubr.f32.mxu0 0.0
      %v713 = vand.u32 %v278, 4294901760
      %v714 = vsub.f32 %v278, %v713
      %v715 = vand.u32 %v714, 4294901760
      %716 = vmatmul.mubr.f32.gmra.mrb[0].mxu0 %v715
      %v717 = vpop.f32.mrb[0].mxu0
      %v718 = vadd.f32 %v616, %v717
      %v719 = vpop.f32.mrb[0].mxu0
      %720 = vmatprep.mubr.f32.mxu0 0.0
      %v721 = vand.u32 %v281, 4294901760
      %v722 = vsub.f32 %v281, %v721
      %v723 = vand.u32 %v722, 4294901760
      %724 = vmatmul.mubr.f32.gmra.mrb[0].mxu0 %v723
      %v725 = vpop.f32.mrb[0].mxu0
      %v726 = vadd.f32 %v623, %v725
      %v727 = vpop.f32.mrb[0].mxu0
      %728 = vmatprep.mubr.f32.mxu0 0.0
      %v729 = vand.u32 %v284, 4294901760
      %v730 = vsub.f32 %v284, %v729
      %v731 = vand.u32 %v730, 4294901760
      %732 = vmatmul.mubr.f32.gmra.mrb[0].mxu0 %v731
      %v733 = vpop.f32.mrb[0].mxu0
      %v734 = vadd.f32 %v630, %v733
      %v735 = vpop.f32.mrb[0].mxu0
      %736 = vmatprep.mubr.f32.mxu0 0.0
      %v737 = vand.u32 %v287, 4294901760
      %v738 = vsub.f32 %v287, %v737
      %v739 = vand.u32 %v738, 4294901760
      %740 = vmatmul.mubr.f32.gmra.mrb[0].mxu0 %v739
      %v741 = vpop.f32.mrb[0].mxu0
      %v742 = vadd.f32 %v637, %v741
      %v743 = vpop.f32.mrb[0].mxu0
      %744 = vdwg.mxu0
      %745 = vmatprep.subr.mxu0 0.0
      %v746 = vand.u32 %v268, 4294901760
      %v747 = vsub.f32 %v268, %v746
      %v748 = vand.u32 %v747, 4294901760
      %749 = vmatpush1.msra.mxu0 %v748
      %750 = vmatprep.subr.mxu0 0.0
      %v751 = vand.u32 %v269, 4294901760
      %v752 = vsub.f32 %v269, %v751
      %v753 = vand.u32 %v752, 4294901760
      %754 = vmatpush1.msra.mxu0 %v753
      %755 = vmatprep.subr.mxu0 0.0
      %v756 = vand.u32 %v270, 4294901760
      %v757 = vsub.f32 %v270, %v756
      %v758 = vand.u32 %v757, 4294901760
      %759 = vmatpush1.msra.mxu0 %v758
      %760 = vmatprep.subr.mxu0 0.0
      %v761 = vand.u32 %v271, 4294901760
      %v762 = vsub.f32 %v271, %v761
      %v763 = vand.u32 %v762, 4294901760
      %764 = vmatpush1.msra.mxu0 %v763
      %765 = vmatprep.subr.mxu0 0.0
      %v766 = vand.u32 %v272, 4294901760
      %v767 = vsub.f32 %v272, %v766
      %v768 = vand.u32 %v767, 4294901760
      %769 = vmatpush1.msra.mxu0 %v768
      %770 = vmatprep.subr.mxu0 0.0
      %v771 = vand.u32 %v273, 4294901760
      %v772 = vsub.f32 %v273, %v771
      %v773 = vand.u32 %v772, 4294901760
      %774 = vmatpush1.msra.mxu0 %v773
      %775 = vmatprep.subr.mxu0 0.0
      %v776 = vand.u32 %v274, 4294901760
      %v777 = vsub.f32 %v274, %v776
      %v778 = vand.u32 %v777, 4294901760
      %779 = vmatpush1.msra.mxu0 %v778
      %780 = vmatprep.subr.mxu0 0.0
      %v781 = vand.u32 %v275, 4294901760
      %v782 = vsub.f32 %v275, %v781
      %v783 = vand.u32 %v782, 4294901760
      %784 = vmatpush1.msra.mxu0 %v783
      %785 = vmatprep.subr.mxu0 0.0
      %786 = vmatpush1.msra.mxu0 0.0
      %787 = vmatprep.subr.mxu0 0.0
      %788 = vmatpush1.msra.mxu0 0.0
      %789 = vmatprep.subr.mxu0 0.0
      %790 = vmatpush1.msra.mxu0 0.0
      %791 = vmatprep.subr.mxu0 0.0
      %792 = vmatpush1.msra.mxu0 0.0
      %793 = vmatprep.subr.mxu0 0.0
      %794 = vmatpush1.msra.mxu0 0.0
      %795 = vmatprep.subr.mxu0 0.0
      %796 = vmatpush1.msra.mxu0 0.0
      %797 = vmatprep.subr.mxu0 0.0
      %798 = vmatpush1.msra.mxu0 0.0
      %799 = vmatprep.subr.mxu0 0.0
      %800 = vmatpush1.msra.mxu0 0.0
      %801 = vmatprep.subr.mxu0 0.0
      %802 = vmatpush1.msra.mxu0 0.0
      %803 = vmatprep.subr.mxu0 0.0
      %804 = vmatpush1.msra.mxu0 0.0
      %805 = vmatprep.subr.mxu0 0.0
      %806 = vmatpush1.msra.mxu0 0.0
      %807 = vmatprep.subr.mxu0 0.0
      %808 = vmatpush1.msra.mxu0 0.0
      %809 = vmatprep.subr.mxu0 0.0
      %810 = vmatpush1.msra.mxu0 0.0
      %811 = vmatprep.subr.mxu0 0.0
      %812 = vmatpush1.msra.mxu0 0.0
      %813 = vmatprep.subr.mxu0 0.0
      %814 = vmatpush1.msra.mxu0 0.0
      %815 = vmatprep.subr.mxu0 0.0
      %816 = vmatpush1.msra.mxu0 0.0
      %817 = vmatprep.subr.mxu0 0.0
      %818 = vmatpush1.msra.mxu0 0.0
      %819 = vmatprep.subr.mxu0 0.0
      %820 = vmatpush1.msra.mxu0 0.0
      %821 = vmatprep.subr.mxu0 0.0
      %822 = vmatpush1.msra.mxu0 0.0
      %823 = vmatprep.subr.mxu0 0.0
      %824 = vmatpush1.msra.mxu0 0.0
      %825 = vmatprep.subr.mxu0 0.0
      %826 = vmatpush1.msra.mxu0 0.0
      %827 = vmatprep.subr.mxu0 0.0
      %828 = vmatpush1.msra.mxu0 0.0
      %829 = vmatprep.subr.mxu0 0.0
      %830 = vmatpush1.msra.mxu0 0.0
      %831 = vmatprep.subr.mxu0 0.0
      %832 = vmatpush1.msra.mxu0 0.0
      %833 = vmatprep.mubr.f32.mxu0 0.0
      %v834 = vand.u32 %v278, 4294901760
      %835 = vmatmul.mubr.f32.gmra.mrb[0].mxu0 %v834
      %v836 = vpop.f32.mrb[0].mxu0
      %v837 = vadd.f32 %v718, %v836
      %v838 = vpop.f32.mrb[0].mxu0
      %839 = vmatprep.mubr.f32.mxu0 0.0
      %v840 = vand.u32 %v281, 4294901760
      %841 = vmatmul.mubr.f32.gmra.mrb[0].mxu0 %v840
      %v842 = vpop.f32.mrb[0].mxu0
      %v843 = vadd.f32 %v726, %v842
      %v844 = vpop.f32.mrb[0].mxu0
      %845 = vmatprep.mubr.f32.mxu0 0.0
      %v846 = vand.u32 %v284, 4294901760
      %847 = vmatmul.mubr.f32.gmra.mrb[0].mxu0 %v846
      %v848 = vpop.f32.mrb[0].mxu0
      %v849 = vadd.f32 %v734, %v848
      %v850 = vpop.f32.mrb[0].mxu0
      %851 = vmatprep.mubr.f32.mxu0 0.0
      %v852 = vand.u32 %v287, 4294901760
      %853 = vmatmul.mubr.f32.gmra.mrb[0].mxu0 %v852
      %v854 = vpop.f32.mrb[0].mxu0
      %v855 = vadd.f32 %v742, %v854
      %v856 = vpop.f32.mrb[0].mxu0
      %857 = vdwg.mxu0
      %858 = vmatprep.subr.mxu0 0.0
      %v859 = vand.u32 %v268, 4294901760
      %860 = vmatpush1.msra.mxu0 %v859
      %861 = vmatprep.subr.mxu0 0.0
      %v862 = vand.u32 %v269, 4294901760
      %863 = vmatpush1.msra.mxu0 %v862
      %864 = vmatprep.subr.mxu0 0.0
      %v865 = vand.u32 %v270, 4294901760
      %866 = vmatpush1.msra.mxu0 %v865
      %867 = vmatprep.subr.mxu0 0.0
      %v868 = vand.u32 %v271, 4294901760
      %869 = vmatpush1.msra.mxu0 %v868
      %870 = vmatprep.subr.mxu0 0.0
      %v871 = vand.u32 %v272, 4294901760
      %872 = vmatpush1.msra.mxu0 %v871
      %873 = vmatprep.subr.mxu0 0.0
      %v874 = vand.u32 %v273, 4294901760
      %875 = vmatpush1.msra.mxu0 %v874
      %876 = vmatprep.subr.mxu0 0.0
      %v877 = vand.u32 %v274, 4294901760
      %878 = vmatpush1.msra.mxu0 %v877
      %879 = vmatprep.subr.mxu0 0.0
      %v880 = vand.u32 %v275, 4294901760
      %881 = vmatpush1.msra.mxu0 %v880
      %882 = vmatprep.subr.mxu0 0.0
      %883 = vmatpush1.msra.mxu0 0.0
      %884 = vmatprep.subr.mxu0 0.0
      %885 = vmatpush1.msra.mxu0 0.0
      %886 = vmatprep.subr.mxu0 0.0
      %887 = vmatpush1.msra.mxu0 0.0
      %888 = vmatprep.subr.mxu0 0.0
      %889 = vmatpush1.msra.mxu0 0.0
      %890 = vmatprep.subr.mxu0 0.0
      %891 = vmatpush1.msra.mxu0 0.0
      %892 = vmatprep.subr.mxu0 0.0
      %893 = vmatpush1.msra.mxu0 0.0
      %894 = vmatprep.subr.mxu0 0.0
      %895 = vmatpush1.msra.mxu0 0.0
      %896 = vmatprep.subr.mxu0 0.0
      %897 = vmatpush1.msra.mxu0 0.0
      %898 = vmatprep.subr.mxu0 0.0
      %899 = vmatpush1.msra.mxu0 0.0
      %900 = vmatprep.subr.mxu0 0.0
      %901 = vmatpush1.msra.mxu0 0.0
      %902 = vmatprep.subr.mxu0 0.0
      %903 = vmatpush1.msra.mxu0 0.0
      %904 = vmatprep.subr.mxu0 0.0
      %905 = vmatpush1.msra.mxu0 0.0
      %906 = vmatprep.subr.mxu0 0.0
      %907 = vmatpush1.msra.mxu0 0.0
      %908 = vmatprep.subr.mxu0 0.0
      %909 = vmatpush1.msra.mxu0 0.0
      %910 = vmatprep.subr.mxu0 0.0
      %911 = vmatpush1.msra.mxu0 0.0
      %912 = vmatprep.subr.mxu0 0.0
      %913 = vmatpush1.msra.mxu0 0.0
      %914 = vmatprep.subr.mxu0 0.0
      %915 = vmatpush1.msra.mxu0 0.0
      %916 = vmatprep.subr.mxu0 0.0
      %917 = vmatpush1.msra.mxu0 0.0
      %918 = vmatprep.subr.mxu0 0.0
      %919 = vmatpush1.msra.mxu0 0.0
      %920 = vmatprep.subr.mxu0 0.0
      %921 = vmatpush1.msra.mxu0 0.0
      %922 = vmatprep.subr.mxu0 0.0
      %923 = vmatpush1.msra.mxu0 0.0
      %924 = vmatprep.subr.mxu0 0.0
      %925 = vmatpush1.msra.mxu0 0.0
      %926 = vmatprep.subr.mxu0 0.0
      %927 = vmatpush1.msra.mxu0 0.0
      %928 = vmatprep.subr.mxu0 0.0
      %929 = vmatpush1.msra.mxu0 0.0
      %930 = vmatprep.mubr.f32.mxu0 0.0
      %v931 = vand.u32 %v278, 4294901760
      %932 = vmatmul.mubr.f32.gmra.mrb[0].mxu0 %v931
      %v933 = vpop.f32.mrb[0].mxu0
      %v934 = vadd.f32 %v837, %v933
      %v935 = vpop.f32.mrb[0].mxu0
      %936 = vmatprep.mubr.f32.mxu0 0.0
      %v937 = vand.u32 %v281, 4294901760
      %938 = vmatmul.mubr.f32.gmra.mrb[0].mxu0 %v937
      %v939 = vpop.f32.mrb[0].mxu0
      %v940 = vadd.f32 %v843, %v939
      %v941 = vpop.f32.mrb[0].mxu0
      %942 = vmatprep.mubr.f32.mxu0 0.0
      %v943 = vand.u32 %v284, 4294901760
      %944 = vmatmul.mubr.f32.gmra.mrb[0].mxu0 %v943
      %v945 = vpop.f32.mrb[0].mxu0
      %v946 = vadd.f32 %v849, %v945
      %v947 = vpop.f32.mrb[0].mxu0
      %948 = vmatprep.mubr.f32.mxu0 0.0
      %v949 = vand.u32 %v287, 4294901760
      %950 = vmatmul.mubr.f32.gmra.mrb[0].mxu0 %v949
      %v951 = vpop.f32.mrb[0].mxu0
      %v952 = vadd.f32 %v855, %v951
      %v953 = vpop.f32.mrb[0].mxu0
      %954 = vdwg.mxu0
      %vm955 = vcmask 64512
      %v956 = vsel %vm955, %v934, 0.0
      %v957 = vrot.slane %v956, 4
      %v958 = vadd.f32 %v956, %v957
      %v959 = vrot.slane %v958, 2
      %v960 = vadd.f32 %v958, %v959
      %v961 = vrot.slane %v960, 1
      %v962 = vadd.f32 %v960, %v961
      %v963 = vsel %vm955, %v940, 0.0
      %v964 = vrot.slane %v963, 4
      %v965 = vadd.f32 %v963, %v964
      %v966 = vrot.slane %v965, 2
      %v967 = vadd.f32 %v965, %v966
      %v968 = vrot.slane %v967, 1
      %v969 = vadd.f32 %v967, %v968
      %v970 = vsel %vm955, %v946, 0.0
      %v971 = vrot.slane %v970, 4
      %v972 = vadd.f32 %v970, %v971
      %v973 = vrot.slane %v972, 2
      %v974 = vadd.f32 %v972, %v973
      %v975 = vrot.slane %v974, 1
      %v976 = vadd.f32 %v974, %v975
      %v977 = vsel %vm955, %v952, 0.0
      %v978 = vrot.slane %v977, 4
      %v979 = vadd.f32 %v977, %v978
      %v980 = vrot.slane %v979, 2
      %v981 = vadd.f32 %v979, %v980
      %v982 = vrot.slane %v981, 1
      %v983 = vadd.f32 %v981, %v982
      %vm988 = vcmask 1041409
      %v989 = vsel %vm988, %v969, %v962
      %vm990 = vcmask 1042434
      %v991 = vsel %vm990, %v976, %v989
      %vm992 = vcmask 1043459
      %v993 = vsel %vm992, %v983, %v991
      %vm995 = vcmask 60416
      %996 = vst.msk [vmem:[%s256] sm:$0xf] %vm995, %v993
      %vm997 = vcmask 130112
      %v998 = vsel %vm997, %v934, 0.0
      %v999 = vrot.slane %v998, 4
      %v1000 = vadd.f32 %v998, %v999
      %v1001 = vrot.slane %v1000, 2
      %v1002 = vadd.f32 %v1000, %v1001
      %v1003 = vrot.slane %v1002, 1
      %v1004 = vadd.f32 %v1002, %v1003
      %v1005 = vsel %vm997, %v940, 0.0
      %v1006 = vrot.slane %v1005, 4
      %v1007 = vadd.f32 %v1005, %v1006
      %v1008 = vrot.slane %v1007, 2
      %v1009 = vadd.f32 %v1007, %v1008
      %v1010 = vrot.slane %v1009, 1
      %v1011 = vadd.f32 %v1009, %v1010
      %v1012 = vsel %vm997, %v946, 0.0
      %v1013 = vrot.slane %v1012, 4
      %v1014 = vadd.f32 %v1012, %v1013
      %v1015 = vrot.slane %v1014, 2
      %v1016 = vadd.f32 %v1014, %v1015
      %v1017 = vrot.slane %v1016, 1
      %v1018 = vadd.f32 %v1016, %v1017
      %v1019 = vsel %vm997, %v952, 0.0
      %v1020 = vrot.slane %v1019, 4
      %v1021 = vadd.f32 %v1019, %v1020
      %v1022 = vrot.slane %v1021, 2
      %v1023 = vadd.f32 %v1021, %v1022
      %v1024 = vrot.slane %v1023, 1
      %v1025 = vadd.f32 %v1023, %v1024
      %v1030 = vsel %vm988, %v1011, %v1004
      %v1031 = vsel %vm990, %v1018, %v1030
      %v1032 = vsel %vm992, %v1025, %v1031
      %1033 = vrot.lane.b32.xlu0 %v1032, 120
      %v1034 = vpop.permute.xlu0 %1033
      %1036 = vst.msk [vmem:[%s263] sm:$0xf] %vm995, %v1034
      %1037 = vadd.xlane.f32.xlu0 %v956
      %v1038 = vpop.xlane.xlu0 %1037
      %1039 = vadd.xlane.f32.xlu0 %v963
      %v1040 = vpop.xlane.xlu0 %1039
      %1041 = vadd.xlane.f32.xlu0 %v970
      %v1042 = vpop.xlane.xlu0 %1041
      %1043 = vadd.xlane.f32.xlu0 %v977
      %v1044 = vpop.xlane.xlu0 %1043
      %v1049 = vlaneseq
      %v1050 = vand.u32 %v1049, 127
      %v1051 = vlaneseq
      %v1052 = vshrl.u32 %v1051, 7
      %v1053 = vsub.s32 %v1050, %v1052
      %v1054 = vrot.slane %v1038, %v1053
      %v1055 = vlaneseq
      %v1056 = vshrl.u32 %v1055, 7
      %v1057 = vsub.s32 %v1050, %v1056
      %v1058 = vrot.slane %v1040, %v1057
      %v1059 = vlaneseq
      %v1060 = vshrl.u32 %v1059, 7
      %v1061 = vsub.s32 %v1050, %v1060
      %v1062 = vrot.slane %v1042, %v1061
      %v1063 = vlaneseq
      %v1064 = vshrl.u32 %v1063, 7
      %v1065 = vsub.s32 %v1050, %v1064
      %v1066 = vrot.slane %v1044, %v1065
      %v1067 = vsel %vm988, %v1058, %v1054
      %v1068 = vsel %vm990, %v1062, %v1067
      %v1069 = vsel %vm992, %v1066, %v1068
      %1071 = vst.msk [vmem:[%s249] sm:$0xf] %vm995, %v1069
      %p1072 = scmp.lt.s32.totalorder %s20, 1
      %s1073 = scalar_select %p1072, %s20, 1
      %p1074 = scmp.lt.s32.totalorder %s21, 0
      %s1075 = scalar_select %p1074, %s21, 0
      %s1076 = sadd.s32 %s1075, %s1073
      %s1077 = smul.addr %s1076, 4
      %s1078 = scalar_lea.vmem %s2, %s1077
      %p1079 = scmp.lt.s32.totalorder %s20, 1
      %s1080 = scalar_select %p1079, %s20, 1
      %p1081 = scmp.lt.s32.totalorder %s21, 0
      %s1082 = scalar_select %p1081, %s21, 0
      %s1083 = sadd.s32 %s1082, %s1080
      %s1084 = smul.addr %s1083, 4
      %s1085 = scalar_lea.vmem %s3, %s1084
      %p1086 = scmp.lt.s32.totalorder %s20, 1
      %s1087 = scalar_select %p1086, %s20, 1
      %p1088 = scmp.lt.s32.totalorder %s21, 0
      %s1089 = scalar_select %p1088, %s21, 0
      %s1090 = sadd.s32 %s1089, %s1087
      %s1091 = smul.addr %s1090, 4
      %s1092 = scalar_lea.vmem %s4, %s1091
      // Predicated region
      $region29: #{coord_att_forward.2} parent=27 // pred_check
        %p1093 = pneg %p97
      $region30: #{coord_att_forward.2} parent=27 // pred_check_branch
        %1095 = sbr.rel (%p1093) target = $region32
      $region31: #{coord_att_forward.2} parent=27 // pred_region
        _
      $region32: #{coord_att_forward.2} parent=27 // pred_fallthru
        _
      // Predicated region
      $region33: #{coord_att_forward.2} parent=27 // pred_check
        %p1096 = pneg %p125
      $region34: #{coord_att_forward.2} parent=27 // pred_check_branch
        %1098 = sbr.rel (%p1096) target = $region36
      $region35: #{coord_att_forward.2} parent=27 // pred_region
        _
      $region36: #{coord_att_forward.2} parent=27 // pred_fallthru
        _
      // Predicated region
      $region37: #{coord_att_forward.2} parent=27 // pred_check
        %p1099 = pneg %p153
      $region38: #{coord_att_forward.2} parent=27 // pred_check_branch
        %1101 = sbr.rel (%p1099) target = $region40
      $region39: #{coord_att_forward.2} parent=27 // pred_region
        _
      $region40: #{coord_att_forward.2} parent=27 // pred_fallthru
        _
    $region28: #{coord_att_forward.2} parent=5 // pred_fallthru
      _
    %p1102 = scmp.le.s32.totalorder 2, %s11
    // Predicated region
    $region41: #{coord_att_forward.2} parent=5 // pred_check
      %p1103 = pneg %p1102
    $region42: #{coord_att_forward.2} parent=5 // pred_check_branch
      %1105 = sbr.rel (%p1103) target = $region44
    $region43: #{coord_att_forward.2} parent=5 // pred_region
      %s1106 = ssub.s32 %s11, 2
      // Predicated region
      $region45: #{coord_att_forward.2} parent=43 // pred_check
        %p1107 = pneg %p103
      $region46: #{coord_att_forward.2} parent=43 // pred_check_branch
        %1109 = sbr.rel (%p1107) target = $region48
      $region47: #{coord_att_forward.2} parent=43 // pred_region
        %p1110 = scmp.lt.s32.totalorder %s22, 1
        %s1111 = scalar_select %p1110, %s22, 1
        %p1112 = scmp.lt.s32.totalorder %s23, 0
        %s1113 = scalar_select %p1112, %s23, 0
        %s1114 = sadd.s32 %s1113, %s1111
        %s1115 = smul.addr %s1114, 4
        %s1116 = scalar_lea.vmem %s2, %s1115
      $region48: #{coord_att_forward.2} parent=43 // pred_fallthru
        _
      // Predicated region
      $region49: #{coord_att_forward.2} parent=43 // pred_check
        %p1117 = pneg %p131
      $region50: #{coord_att_forward.2} parent=43 // pred_check_branch
        %1119 = sbr.rel (%p1117) target = $region52
      $region51: #{coord_att_forward.2} parent=43 // pred_region
        %p1120 = scmp.lt.s32.totalorder %s22, 1
        %s1121 = scalar_select %p1120, %s22, 1
        %p1122 = scmp.lt.s32.totalorder %s23, 0
        %s1123 = scalar_select %p1122, %s23, 0
        %s1124 = sadd.s32 %s1123, %s1121
        %s1125 = smul.addr %s1124, 4
        %s1126 = scalar_lea.vmem %s3, %s1125
      $region52: #{coord_att_forward.2} parent=43 // pred_fallthru
        _
      // Predicated region
      $region53: #{coord_att_forward.2} parent=43 // pred_check
        %p1127 = pneg %p159
      $region54: #{coord_att_forward.2} parent=43 // pred_check_branch
        %1129 = sbr.rel (%p1127) target = $region56
      $region55: #{coord_att_forward.2} parent=43 // pred_region
        %p1130 = scmp.lt.s32.totalorder %s22, 1
        %s1131 = scalar_select %p1130, %s22, 1
        %p1132 = scmp.lt.s32.totalorder %s23, 0
        %s1133 = scalar_select %p1132, %s23, 0
        %s1134 = sadd.s32 %s1133, %s1131
        %s1135 = smul.addr %s1134, 4
        %s1136 = scalar_lea.vmem %s4, %s1135
      $region56: #{coord_att_forward.2} parent=43 // pred_fallthru
        _
    $region44: #{coord_att_forward.2} parent=5 // pred_fallthru
      _
  $region6: #{coord_att_forward.2} parent=0 // loop_footer
    %s15 = sadd.s32 1, %s11
  $region7: #{coord_att_forward.2} parent=0 // loop_footer_branch
    %10 = sbr.rel target = $region3
  $region8: #{coord_att_forward.2} parent=0 // loop_exit
    _

</llo_original>
